<compile_context>
chip_gen: v7x
topology: tpu7x:2x2x1
jax: 0.10.0
libtpu: 0.0.40
codegen_flags: <defaults>
</compile_context>

<pallas_src>
import functools

import jax
import jax.numpy as jnp
from jax import lax
from jax.experimental import pallas as pl
from jax.experimental.pallas import tpu as pltpu


def _linear_attention_kernel(x_ref, wqkv_ref, wout_ref, b_ref, g1_ref, g2_ref,
                             o_ref, xn_ref, acc_ref, *, scale):
    # x_ref:    (1, C, HW)        input block, resident across the heads axis
    # wqkv_ref: (3, 1, D, C)      this head's q/k/v projection weights
    # wout_ref: (1, C, D)         this head's output-projection weights
    # b_ref, g1_ref, g2_ref: (C, 1)
    # o_ref:    (1, C, HW)        final output block (written at last head)
    # xn_ref:   (C, HW) f32       RMSNorm(x) scratch, computed once per batch
    # acc_ref:  (C, HW) f32       output 1x1-conv accumulator over heads
    h = pl.program_id(1)

    @pl.when(h == 0)
    def _init():
        x = x_ref[0].astype(jnp.float32)                           # (C, HW)
        c = x.shape[0]
        ssum = jnp.sum(x * x, axis=0, keepdims=True)               # (1, HW)
        inv = lax.rsqrt(jnp.maximum(ssum, 1e-24))                  # 1/max(||x||,1e-12)
        xn_ref[...] = x * inv * (g1_ref[...].astype(jnp.float32) * (c ** 0.5))
        acc_ref[...] = jnp.zeros_like(acc_ref)

    xn = xn_ref[...]                                               # (C, HW) f32

    # Per-head q/k/v 1x1-conv projections: (D, C) @ (C, HW) -> (D, HW)
    q = jnp.dot(wqkv_ref[0, 0].astype(jnp.float32), xn,
                preferred_element_type=jnp.float32)
    k = jnp.dot(wqkv_ref[1, 0].astype(jnp.float32), xn,
                preferred_element_type=jnp.float32)
    v = jnp.dot(wqkv_ref[2, 0].astype(jnp.float32), xn,
                preferred_element_type=jnp.float32)

    # softmax over dim_head (sublane axis) for q, then * scale
    q = jnp.exp(q - jnp.max(q, axis=0, keepdims=True))
    q = q * (scale / jnp.sum(q, axis=0, keepdims=True))
    # softmax over spatial (lane axis) for k
    k = jnp.exp(k - jnp.max(k, axis=1, keepdims=True))
    k = k / jnp.sum(k, axis=1, keepdims=True)

    # context[d, e] = sum_n k[d, n] * v[e, n]            -> (D, D)
    context = lax.dot_general(k, v, (((1,), (1,)), ((), ())),
                              preferred_element_type=jnp.float32)
    # out_h[e, n]  = sum_d context[d, e] * q[d, n]       -> (D, HW)
    out_h = lax.dot_general(context, q, (((0,), (0,)), ((), ())),
                            preferred_element_type=jnp.float32)

    # Accumulate this head's output 1x1-conv contribution: (C, D) @ (D, HW)
    acc_ref[...] += jnp.dot(wout_ref[0].astype(jnp.float32), out_h,
                            preferred_element_type=jnp.float32)

    @pl.when(h == pl.num_programs(1) - 1)
    def _finalize():
        y = acc_ref[...] + b_ref[...].astype(jnp.float32)          # (C, HW)
        c = y.shape[0]
        ssum = jnp.sum(y * y, axis=0, keepdims=True)
        inv = lax.rsqrt(jnp.maximum(ssum, 1e-24))
        gsc = g2_ref[...].astype(jnp.float32) * (c ** 0.5)
        o_ref[0] = (y * inv * gsc).astype(o_ref.dtype)


def linear_attention(x, w_qkv, w_out, b_out, g1, g2, *, heads=4, dim_head=32):
    """LinearAttention forward. x: (N, C, H, W) -> (N, C, H, W)."""
    n, c, h, w = x.shape
    hw = h * w
    hidden = heads * dim_head
    scale = dim_head ** (-0.5)
    itemsize = jnp.dtype(x.dtype).itemsize

    x3 = x.reshape(n, c, hw)
    # (3*hidden, C) -> (3, heads, D, C): contiguous reshape (free), lets the
    # BlockSpec index map pick this head's q/k/v rows without HBM copies.
    wqkv4 = w_qkv.reshape(3, heads, dim_head, c)
    # (C, hidden) -> (heads, C, D): head-major so the per-head block has a
    # natural (C, D) last-two-dims layout inside the kernel.
    wout3 = jnp.transpose(w_out.reshape(c, heads, dim_head), (1, 0, 2))
    b_2d = b_out.reshape(c, 1)
    g1_2d = g1.reshape(c, 1)
    g2_2d = g2.reshape(c, 1)

    flops = int(n * (2 * 3 * hidden * c * hw          # qkv projection
                     + 4 * hidden * dim_head * hw     # context + out per head
                     + 2 * c * hidden * hw            # output projection
                     + (10 * c + 8 * hidden) * hw))   # norms / softmax elementwise
    transcendentals = int(n * (2 * hidden * hw + 2 * hw))
    bytes_accessed = int(itemsize * (2 * n * c * hw)
                         + itemsize * (3 * hidden * c + c * hidden + 3 * c))

    out3 = pl.pallas_call(
        functools.partial(_linear_attention_kernel, scale=scale),
        out_shape=jax.ShapeDtypeStruct((n, c, hw), x.dtype),
        grid_spec=pltpu.PrefetchScalarGridSpec(
            num_scalar_prefetch=0,
            grid=(n, heads),
            in_specs=[
                pl.BlockSpec((1, c, hw), lambda b, hh: (b, 0, 0)),          # x
                pl.BlockSpec((3, 1, dim_head, c), lambda b, hh: (0, hh, 0, 0)),  # w_qkv
                pl.BlockSpec((1, c, dim_head), lambda b, hh: (hh, 0, 0)),   # w_out
                pl.BlockSpec((c, 1), lambda b, hh: (0, 0)),                 # bias
                pl.BlockSpec((c, 1), lambda b, hh: (0, 0)),                 # g1
                pl.BlockSpec((c, 1), lambda b, hh: (0, 0)),                 # g2
            ],
            out_specs=pl.BlockSpec((1, c, hw), lambda b, hh: (b, 0, 0)),
            scratch_shapes=[
                pltpu.VMEM((c, hw), jnp.float32),   # RMSNorm(x)
                pltpu.VMEM((c, hw), jnp.float32),   # output-conv accumulator
            ],
        ),
        compiler_params=pltpu.CompilerParams(
            dimension_semantics=("parallel", "arbitrary"),
            vmem_limit_bytes=64 * 1024 * 1024),
        cost_estimate=pl.CostEstimate(
            flops=flops, transcendentals=transcendentals,
            bytes_accessed=bytes_accessed),
    )(x3, wqkv4, wout3, b_2d, g1_2d, g2_2d)

    return out3.reshape(n, c, h, w)


# ---------------------------------------------------------------------------
# Pure-JAX reference (mirrors the PyTorch module).
# ---------------------------------------------------------------------------
def _rmsnorm_ref(t, g):
    # t: (N, C, HW); F.normalize(dim=1) * g * sqrt(C)
    c = t.shape[1]
    nrm = jnp.sqrt(jnp.sum(t * t, axis=1, keepdims=True))
    return (t / jnp.maximum(nrm, 1e-12)) * g.reshape(1, c, 1) * (c ** 0.5)


def linear_attention_ref(x, w_qkv, w_out, b_out, g1, g2, *, heads=4, dim_head=32):
    n, c, h, w = x.shape
    hw = h * w
    hidden = heads * dim_head
    scale = dim_head ** (-0.5)

    x3 = x.reshape(n, c, hw)
    xn = _rmsnorm_ref(x3, g1)
    qkv = jnp.einsum("oc,bcn->bon", w_qkv, xn)
    q, k, v = jnp.split(qkv, 3, axis=1)
    q = q.reshape(n, heads, dim_head, hw)
    k = k.reshape(n, heads, dim_head, hw)
    v = v.reshape(n, heads, dim_head, hw)
    q = jax.nn.softmax(q, axis=-2) * scale
    k = jax.nn.softmax(k, axis=-1)
    context = jnp.einsum("bhdn,bhen->bhde", k, v)
    out = jnp.einsum("bhde,bhdn->bhen", context, q)
    out = out.reshape(n, hidden, hw)
    y = jnp.einsum("oi,bin->bon", w_out, out) + b_out.reshape(1, c, 1)
    y = _rmsnorm_ref(y, g2)
    return y.reshape(n, c, h, w)


if __name__ == "__main__":
    key = jax.random.PRNGKey(0)
    dim, heads, dim_head = 4, 4, 32
    hidden = heads * dim_head
    n, h, w = 2, 16, 16

    k0, k1, k2, k3 = jax.random.split(key, 4)
    x = jax.random.normal(k0, (n, dim, h, w), dtype=jnp.float32)
    w_qkv = 0.1 * jax.random.normal(k1, (3 * hidden, dim), dtype=jnp.float32)
    w_out = 0.1 * jax.random.normal(k2, (dim, hidden), dtype=jnp.float32)
    b_out = 0.1 * jax.random.normal(k3, (dim,), dtype=jnp.float32)
    g1 = jnp.ones((dim,), jnp.float32)   # RMSNorm gains init to ones (as in the module)
    g2 = jnp.ones((dim,), jnp.float32)

    out = linear_attention(x, w_qkv, w_out, b_out, g1, g2,
                           heads=heads, dim_head=dim_head)
    out = jax.block_until_ready(out)

    ref = linear_attention_ref(x, w_qkv, w_out, b_out, g1, g2,
                               heads=heads, dim_head=dim_head)

    assert out.shape == x.shape and out.dtype == x.dtype
    assert jnp.allclose(out, ref, atol=1e-4, rtol=1e-4), (
        float(jnp.max(jnp.abs(out - ref))))

    print("KERNEL_OK")
</pallas_src>

<mosaic_0001>
module attributes {stable_mosaic.version = 11 : i64} {
  func.func @_linear_attention_kernel(%arg0: i32, %arg1: i32, %arg2: memref<1x4x256xf32, #tpu.memory_space<vmem>>, %arg3: memref<3x1x32x4xf32, #tpu.memory_space<vmem>>, %arg4: memref<1x4x32xf32, #tpu.memory_space<vmem>>, %arg5: memref<4x1xf32, #tpu.memory_space<vmem>>, %arg6: memref<4x1xf32, #tpu.memory_space<vmem>>, %arg7: memref<4x1xf32, #tpu.memory_space<vmem>>, %arg8: memref<1x4x256xf32, #tpu.memory_space<vmem>>, %arg9: memref<4x256xf32, #tpu.memory_space<vmem>>, %arg10: memref<4x256xf32, #tpu.memory_space<vmem>>) attributes {dimension_semantics = [#tpu.dimension_semantics<parallel>, #tpu.dimension_semantics<arbitrary>], iteration_bounds = array<i64: 2, 4>, scalar_prefetch = 0 : i64, scratch_operands = 2 : i64, tpu.core_type = #tpu.core_type<tc>, window_params = [{transform_indices = @transform_0, window_bounds = array<i64: 1, 4, 256>}, {transform_indices = @transform_1, window_bounds = array<i64: 3, 1, 32, 4>}, {transform_indices = @transform_2, window_bounds = array<i64: 1, 4, 32>}, {pipeline_mode = #tpu.pipeline_mode<synchronous>, transform_indices = @transform_3, window_bounds = array<i64: 4, 1>}, {pipeline_mode = #tpu.pipeline_mode<synchronous>, transform_indices = @transform_4, window_bounds = array<i64: 4, 1>}, {pipeline_mode = #tpu.pipeline_mode<synchronous>, transform_indices = @transform_5, window_bounds = array<i64: 4, 1>}, {transform_indices = @transform_6, window_bounds = array<i64: 1, 4, 256>}]} {
    %c0_i32 = arith.constant 0 : i32
    %0 = arith.cmpi eq, %arg1, %c0_i32 : i32
    %1 = arith.extui %0 : i1 to i32
    %c0_i32_0 = arith.constant 0 : i32
    %2 = arith.cmpi ne, %1, %c0_i32_0 : i32
    scf.if %2 {
      %c0_30 = arith.constant 0 : index
      %c0_31 = arith.constant 0 : index
      %c0_32 = arith.constant 0 : index
      %44 = vector.load %arg2[%c0_30, %c0_31, %c0_32] : memref<1x4x256xf32, #tpu.memory_space<vmem>>, vector<1x4x256xf32>
      %45 = vector.shape_cast %44 : vector<1x4x256xf32> to vector<4x256xf32>
      %46 = arith.mulf %45, %45 : vector<4x256xf32>
      %cst_33 = arith.constant dense<0.000000e+00> : vector<256xf32>
      %47 = vector.multi_reduction <add>, %46, %cst_33 [0] : vector<4x256xf32> to vector<256xf32>
      %48 = vector.shape_cast %47 : vector<256xf32> to vector<1x256xf32>
      %cst_34 = arith.constant 1.000000e-24 : f32
      %49 = vector.broadcast %cst_34 : f32 to vector<1x256xf32>
      %50 = arith.maximumf %48, %49 : vector<1x256xf32>
      %51 = math.rsqrt %50 : vector<1x256xf32>
      %52 = vector.broadcast %51 : vector<1x256xf32> to vector<4x256xf32>
      %53 = arith.mulf %45, %52 : vector<4x256xf32>
      %c0_35 = arith.constant 0 : index
      %c0_36 = arith.constant 0 : index
      %54 = vector.load %arg6[%c0_35, %c0_36] : memref<4x1xf32, #tpu.memory_space<vmem>>, vector<4x1xf32>
      %cst_37 = arith.constant 2.000000e+00 : f32
      %55 = vector.broadcast %cst_37 : f32 to vector<4x1xf32>
      %56 = arith.mulf %54, %55 : vector<4x1xf32>
      %57 = vector.broadcast %56 : vector<4x1xf32> to vector<4x256xf32>
      %58 = arith.mulf %53, %57 : vector<4x256xf32>
      %c0_38 = arith.constant 0 : index
      %c0_39 = arith.constant 0 : index
      %59 = vector.load %arg9[%c0_38, %c0_39] : memref<4x256xf32, #tpu.memory_space<vmem>>, vector<4x256xf32>
      tpu.vector_store %arg9[%c0_38, %c0_39], %58 {strides = array<i32>} : memref<4x256xf32, #tpu.memory_space<vmem>>, vector<4x256xf32>,
      %cst_40 = arith.constant 0.000000e+00 : f32
      %60 = vector.broadcast %cst_40 : f32 to vector<4x256xf32>
      %c0_41 = arith.constant 0 : index
      %c0_42 = arith.constant 0 : index
      %61 = vector.load %arg10[%c0_41, %c0_42] : memref<4x256xf32, #tpu.memory_space<vmem>>, vector<4x256xf32>
      tpu.vector_store %arg10[%c0_41, %c0_42], %60 {strides = array<i32>} : memref<4x256xf32, #tpu.memory_space<vmem>>, vector<4x256xf32>,
    } else {
    }
    %c0 = arith.constant 0 : index
    %c0_1 = arith.constant 0 : index
    %3 = vector.load %arg9[%c0, %c0_1] : memref<4x256xf32, #tpu.memory_space<vmem>>, vector<4x256xf32>
    %c0_2 = arith.constant 0 : index
    %c0_3 = arith.constant 0 : index
    %c0_4 = arith.constant 0 : index
    %c0_5 = arith.constant 0 : index
    %4 = vector.load %arg3[%c0_2, %c0_3, %c0_4, %c0_5] : memref<3x1x32x4xf32, #tpu.memory_space<vmem>>, vector<1x1x32x4xf32>
    %5 = vector.shape_cast %4 : vector<1x1x32x4xf32> to vector<32x4xf32>
    %cst = arith.constant dense<0.000000e+00> : vector<32x256xf32>
    %6 = tpu.matmul %5, %3, %cst {dimension_numbers = #tpu.dot_dimension_numbers<[1], [0], [0], [1], [0, 0, 1, 1], [], []>} : vector<32x4xf32>, vector<4x256xf32>, vector<32x256xf32> -> vector<32x256xf32>
    %c1 = arith.constant 1 : index
    %c0_6 = arith.constant 0 : index
    %c0_7 = arith.constant 0 : index
    %c0_8 = arith.constant 0 : index
    %7 = vector.load %arg3[%c1, %c0_6, %c0_7, %c0_8] : memref<3x1x32x4xf32, #tpu.memory_space<vmem>>, vector<1x1x32x4xf32>
    %8 = vector.shape_cast %7 : vector<1x1x32x4xf32> to vector<32x4xf32>
    %cst_9 = arith.constant dense<0.000000e+00> : vector<32x256xf32>
    %9 = tpu.matmul %8, %3, %cst_9 {dimension_numbers = #tpu.dot_dimension_numbers<[1], [0], [0], [1], [0, 0, 1, 1], [], []>} : vector<32x4xf32>, vector<4x256xf32>, vector<32x256xf32> -> vector<32x256xf32>
    %c2 = arith.constant 2 : index
    %c0_10 = arith.constant 0 : index
    %c0_11 = arith.constant 0 : index
    %c0_12 = arith.constant 0 : index
    %10 = vector.load %arg3[%c2, %c0_10, %c0_11, %c0_12] : memref<3x1x32x4xf32, #tpu.memory_space<vmem>>, vector<1x1x32x4xf32>
    %11 = vector.shape_cast %10 : vector<1x1x32x4xf32> to vector<32x4xf32>
    %cst_13 = arith.constant dense<0.000000e+00> : vector<32x256xf32>
    %12 = tpu.matmul %11, %3, %cst_13 {dimension_numbers = #tpu.dot_dimension_numbers<[1], [0], [0], [1], [0, 0, 1, 1], [], []>} : vector<32x4xf32>, vector<4x256xf32>, vector<32x256xf32> -> vector<32x256xf32>
    %cst_14 = arith.constant dense<0xFF800000> : vector<256xf32>
    %13 = vector.multi_reduction <maximumf>, %6, %cst_14 [0] : vector<32x256xf32> to vector<256xf32>
    %14 = vector.shape_cast %13 : vector<256xf32> to vector<1x256xf32>
    %15 = vector.broadcast %14 : vector<1x256xf32> to vector<32x256xf32>
    %16 = arith.subf %6, %15 : vector<32x256xf32>
    %17 = math.exp %16 : vector<32x256xf32>
    %cst_15 = arith.constant dense<0.000000e+00> : vector<256xf32>
    %18 = vector.multi_reduction <add>, %17, %cst_15 [0] : vector<32x256xf32> to vector<256xf32>
    %19 = vector.shape_cast %18 : vector<256xf32> to vector<1x256xf32>
    %cst_16 = arith.constant 0.176776692 : f32
    %20 = vector.broadcast %cst_16 : f32 to vector<1x256xf32>
    %21 = arith.divf %20, %19 : vector<1x256xf32>
    %22 = vector.broadcast %21 : vector<1x256xf32> to vector<32x256xf32>
    %23 = arith.mulf %17, %22 : vector<32x256xf32>
    %cst_17 = arith.constant dense<0xFF800000> : vector<32xf32>
    %24 = vector.multi_reduction <maximumf>, %9, %cst_17 [1] : vector<32x256xf32> to vector<32xf32>
    %25 = vector.shape_cast %24 : vector<32xf32> to vector<32x1xf32>
    %26 = vector.broadcast %25 : vector<32x1xf32> to vector<32x256xf32>
    %27 = arith.subf %9, %26 : vector<32x256xf32>
    %28 = math.exp %27 : vector<32x256xf32>
    %cst_18 = arith.constant dense<0.000000e+00> : vector<32xf32>
    %29 = vector.multi_reduction <add>, %28, %cst_18 [1] : vector<32x256xf32> to vector<32xf32>
    %30 = vector.shape_cast %29 : vector<32xf32> to vector<32x1xf32>
    %31 = vector.broadcast %30 : vector<32x1xf32> to vector<32x256xf32>
    %32 = arith.divf %28, %31 : vector<32x256xf32>
    %cst_19 = arith.constant dense<0.000000e+00> : vector<32x32xf32>
    %33 = tpu.matmul %32, %12, %cst_19 {dimension_numbers = #tpu.dot_dimension_numbers<[1], [1], [0], [0], [0, 0, 1, 0], [], []>} : vector<32x256xf32>, vector<32x256xf32>, vector<32x32xf32> -> vector<32x32xf32>
    %cst_20 = arith.constant dense<0.000000e+00> : vector<32x256xf32>
    %34 = tpu.matmul %33, %23, %cst_20 {dimension_numbers = #tpu.dot_dimension_numbers<[0], [0], [1], [1], [0, 1, 1, 1], [], []>} : vector<32x32xf32>, vector<32x256xf32>, vector<32x256xf32> -> vector<32x256xf32>
    %c0_21 = arith.constant 0 : index
    %c0_22 = arith.constant 0 : index
    %35 = vector.load %arg10[%c0_21, %c0_22] : memref<4x256xf32, #tpu.memory_space<vmem>>, vector<4x256xf32>
    %c0_23 = arith.constant 0 : index
    %c0_24 = arith.constant 0 : index
    %c0_25 = arith.constant 0 : index
    %36 = vector.load %arg4[%c0_23, %c0_24, %c0_25] : memref<1x4x32xf32, #tpu.memory_space<vmem>>, vector<1x4x32xf32>
    %37 = vector.shape_cast %36 : vector<1x4x32xf32> to vector<4x32xf32>
    %cst_26 = arith.constant dense<0.000000e+00> : vector<4x256xf32>
    %38 = tpu.matmul %37, %34, %cst_26 {dimension_numbers = #tpu.dot_dimension_numbers<[1], [0], [0], [1], [0, 0, 1, 1], [], []>} : vector<4x32xf32>, vector<32x256xf32>, vector<4x256xf32> -> vector<4x256xf32>
    %39 = arith.addf %35, %38 : vector<4x256xf32>
    %c0_27 = arith.constant 0 : index
    %c0_28 = arith.constant 0 : index
    %40 = vector.load %arg10[%c0_27, %c0_28] : memref<4x256xf32, #tpu.memory_space<vmem>>, vector<4x256xf32>
    tpu.vector_store %arg10[%c0_27, %c0_28], %39 {strides = array<i32>} : memref<4x256xf32, #tpu.memory_space<vmem>>, vector<4x256xf32>,
    %c3_i32 = arith.constant 3 : i32
    %41 = arith.cmpi eq, %arg1, %c3_i32 : i32
    %42 = arith.extui %41 : i1 to i32
    %c0_i32_29 = arith.constant 0 : i32
    %43 = arith.cmpi ne, %42, %c0_i32_29 : i32
    scf.if %43 {
      %c0_30 = arith.constant 0 : index
      %c0_31 = arith.constant 0 : index
      %44 = vector.load %arg10[%c0_30, %c0_31] : memref<4x256xf32, #tpu.memory_space<vmem>>, vector<4x256xf32>
      %c0_32 = arith.constant 0 : index
      %c0_33 = arith.constant 0 : index
      %45 = vector.load %arg5[%c0_32, %c0_33] : memref<4x1xf32, #tpu.memory_space<vmem>>, vector<4x1xf32>
      %46 = vector.broadcast %45 : vector<4x1xf32> to vector<4x256xf32>
      %47 = arith.addf %44, %46 : vector<4x256xf32>
      %48 = arith.mulf %47, %47 : vector<4x256xf32>
      %cst_34 = arith.constant dense<0.000000e+00> : vector<256xf32>
      %49 = vector.multi_reduction <add>, %48, %cst_34 [0] : vector<4x256xf32> to vector<256xf32>
      %50 = vector.shape_cast %49 : vector<256xf32> to vector<1x256xf32>
      %cst_35 = arith.constant 1.000000e-24 : f32
      %51 = vector.broadcast %cst_35 : f32 to vector<1x256xf32>
      %52 = arith.maximumf %50, %51 : vector<1x256xf32>
      %53 = math.rsqrt %52 : vector<1x256xf32>
      %c0_36 = arith.constant 0 : index
      %c0_37 = arith.constant 0 : index
      %54 = vector.load %arg7[%c0_36, %c0_37] : memref<4x1xf32, #tpu.memory_space<vmem>>, vector<4x1xf32>
      %cst_38 = arith.constant 2.000000e+00 : f32
      %55 = vector.broadcast %cst_38 : f32 to vector<4x1xf32>
      %56 = arith.mulf %54, %55 : vector<4x1xf32>
      %57 = vector.broadcast %53 : vector<1x256xf32> to vector<4x256xf32>
      %58 = arith.mulf %47, %57 : vector<4x256xf32>
      %59 = vector.broadcast %56 : vector<4x1xf32> to vector<4x256xf32>
      %60 = arith.mulf %58, %59 : vector<4x256xf32>
      %c0_39 = arith.constant 0 : index
      %c0_40 = arith.constant 0 : index
      %c0_41 = arith.constant 0 : index
      %61 = vector.load %arg8[%c0_39, %c0_40, %c0_41] : memref<1x4x256xf32, #tpu.memory_space<vmem>>, vector<1x4x256xf32>
      %62 = vector.shape_cast %61 : vector<1x4x256xf32> to vector<4x256xf32>
      %63 = vector.shape_cast %60 : vector<4x256xf32> to vector<1x4x256xf32>
      tpu.vector_store %arg8[%c0_39, %c0_40, %c0_41], %63 {strides = array<i32>} : memref<1x4x256xf32, #tpu.memory_space<vmem>>, vector<1x4x256xf32>,
    } else {
    }
    return
  }
  func.func @transform_0(%arg0: i32, %arg1: i32) -> (i32, i32, i32) {
    %c0_i32 = arith.constant 0 : i32
    %c0_i32_0 = arith.constant 0 : i32
    %c0_i32_1 = arith.constant 0 : i32
    return %arg0, %c0_i32, %c0_i32_0 : i32, i32, i32
  }
  func.func @transform_1(%arg0: i32, %arg1: i32) -> (i32, i32, i32, i32) {
    %c0_i32 = arith.constant 0 : i32
    %c0_i32_0 = arith.constant 0 : i32
    %c0_i32_1 = arith.constant 0 : i32
    %c0_i32_2 = arith.constant 0 : i32
    return %c0_i32, %arg1, %c0_i32_0, %c0_i32_1 : i32, i32, i32, i32
  }
  func.func @transform_2(%arg0: i32, %arg1: i32) -> (i32, i32, i32) {
    %c0_i32 = arith.constant 0 : i32
    %c0_i32_0 = arith.constant 0 : i32
    %c0_i32_1 = arith.constant 0 : i32
    return %arg1, %c0_i32, %c0_i32_0 : i32, i32, i32
  }
  func.func @transform_3(%arg0: i32, %arg1: i32) -> (i32, i32) {
    %c0_i32 = arith.constant 0 : i32
    %c0_i32_0 = arith.constant 0 : i32
    %c0_i32_1 = arith.constant 0 : i32
    return %c0_i32, %c0_i32_0 : i32, i32
  }
  func.func @transform_4(%arg0: i32, %arg1: i32) -> (i32, i32) {
    %c0_i32 = arith.constant 0 : i32
    %c0_i32_0 = arith.constant 0 : i32
    %c0_i32_1 = arith.constant 0 : i32
    return %c0_i32, %c0_i32_0 : i32, i32
  }
  func.func @transform_5(%arg0: i32, %arg1: i32) -> (i32, i32) {
    %c0_i32 = arith.constant 0 : i32
    %c0_i32_0 = arith.constant 0 : i32
    %c0_i32_1 = arith.constant 0 : i32
    return %c0_i32, %c0_i32_0 : i32, i32
  }
  func.func @transform_6(%arg0: i32, %arg1: i32) -> (i32, i32, i32) {
    %c0_i32 = arith.constant 0 : i32
    %c0_i32_0 = arith.constant 0 : i32
    %c0_i32_1 = arith.constant 0 : i32
    return %arg0, %c0_i32, %c0_i32_0 : i32, i32, i32
  }
}

</mosaic_0001>

<llo_original>
// kernel: tpu_custom_call.1
$region0: #{tpu_custom_call.1}
  #allocation0 [shape = 'u32[]', space=smem, size = 0x4, offset = 0x4, fixed_abs, tag = 'smem constant byte address 0x4 - core index']
  #allocation1 [shape = 'u32[144,128]{1,0:T(1,128)}', space=vmem, size = 0x12000, scoped, tag = 'internal scratch']
  #allocation2 [shape = 'f32[4,256]{1,0:T(4,128)}', space=vmem, size = 0x1000, scoped, tag = 'scratch operand']
  #allocation3 [shape = 'f32[4,256]{1,0:T(4,128)}', space=vmem, size = 0x1000, scoped, tag = 'scratch operand']
  #allocation16 [shape = 's32[]', space=sflag, size = 0x4, offset = 0, fixed_abs, tag = 'sflag constant byte address 0x0 - dummy sync flag']
  %s0 = inlined_call_operand.hbm [shape: f32[2,4,256], index: 0, kind: input, shape index: {}]
  %s1 = inlined_call_operand.hbm [shape: f32[3,4,32,4], index: 1, kind: input, shape index: {}]
  %s2 = inlined_call_operand.hbm [shape: f32[4,4,32], index: 2, kind: input, shape index: {}]
  %s3 = inlined_call_operand.hbm [shape: f32[4,1], index: 3, kind: input, shape index: {}]
  %s4 = inlined_call_operand.hbm [shape: f32[4,1], index: 4, kind: input, shape index: {}]
  %s5 = inlined_call_operand.hbm [shape: f32[4,1], index: 5, kind: input, shape index: {}]
  %s6 = inlined_call_operand.hbm [shape: f32[2,4,256], index: 6, kind: output, shape index: {}]
  %s7 = sld [smem:[#allocation0]]
  $region89: #{tpu_custom_call.1} parent=0
    _
  %s9 = ssub.s32 1, %s7
  %s10 = scalar_select 0, %s9, %s7
  $region1: #{tpu_custom_call.1} parent=0
    #allocation4 [shape = 'u8[8192]{0}', space=vmem, size = 0x2000, scoped, tag = 'input window, operand 0']
    #allocation5 [shape = 's32[2]{0}', space=sflag, size = 0x8, scoped, tag = 'scoped memory for tpu_custom_call.1']
    #allocation6 [shape = 's32[2]{0}', space=sflag, size = 0x8, scoped, tag = 'scoped memory for tpu_custom_call.1']
    #allocation7 [shape = 'u8[98304]{0}', space=vmem, size = 0x18000, scoped, tag = 'input window, operand 1']
    #allocation8 [shape = 's32[2]{0}', space=sflag, size = 0x8, scoped, tag = 'scoped memory for tpu_custom_call.1']
    #allocation9 [shape = 'u8[4096]{0}', space=vmem, size = 0x1000, scoped, tag = 'input window, operand 2']
    #allocation10 [shape = 'u8[2048]{0}', space=vmem, size = 0x800, scoped, tag = 'input window, operand 3, single buffered']
    #allocation11 [shape = 's32[1]{0}', space=sflag, size = 0x4, scoped, tag = 'scoped memory for tpu_custom_call.1']
    #allocation12 [shape = 'u8[2048]{0}', space=vmem, size = 0x800, scoped, tag = 'input window, operand 4, single buffered']
    #allocation13 [shape = 'u8[2048]{0}', space=vmem, size = 0x800, scoped, tag = 'input window, operand 5, single buffered']
    #allocation14 [shape = 's32[1]{0}', space=sflag, size = 0x4, scoped, tag = 'scoped memory for tpu_custom_call.1']
    #allocation15 [shape = 'u8[8192]{0}', space=vmem, size = 0x2000, scoped, tag = 'output window, operand 0']
    %11 = vsyncpa [#allocation5], 0
    %s12 = scalar_lea.sflag [#allocation5], 1
    %13 = vsyncpa %s12, 0
    %14 = vsyncpa [#allocation8], 0
    %s15 = scalar_lea.sflag [#allocation8], 1
    %16 = vsyncpa %s15, 0
    %17 = vsyncpa [#allocation11], 0
    %18 = vsyncpa [#allocation14], 0
    %19 = vsyncpa [#allocation6], 0
    %s20 = scalar_lea.sflag [#allocation6], 1
    %21 = vsyncpa %s20, 0
    loop: start=0, step=1, limit=10
    $region2: #{tpu_custom_call.1} parent=1 // loop_pre_header
      _
    $region3: #{tpu_custom_call.1} parent=1 // loop_header
      %s23 = sphi 0, %s27
      %p24 = scmp.ge.s32.totalorder %s23, 10
      %s30 = sphi 0, %s42
      %s31 = sphi 0, %s38
      %s32 = sphi 0, %s30
      %s33 = sphi 0, %s31
      %s34 = sphi 0, %s32
      %s35 = sphi 0, %s33
      %s45 = sphi 0, %s47
      %s48 = sphi 0, %s45
      %s49 = sphi 0, %s48
      %s65 = sphi 0, %s49
      %s71 = sphi 0, %s73
      %s74 = sphi 0, %s71
      %s75 = sphi 0, %s74
      %s91 = sphi 0, %s75
      %s97 = sphi 0, %s99
      %s100 = sphi 0, %s97
      %s101 = sphi 0, %s100
      %s117 = sphi 0, %s101
      %s121 = sphi 0, %s121
      %s123 = sphi 0, %s121
      %s124 = sphi 0, %s123
      %s138 = sphi 0, %s124
      %s142 = sphi 0, %s142
      %s144 = sphi 0, %s142
      %s145 = sphi 0, %s144
      %s159 = sphi 0, %s145
      %s163 = sphi 0, %s163
      %s165 = sphi 0, %s163
      %s166 = sphi 0, %s165
      %s180 = sphi 0, %s166
      %s186 = sphi 0, %s188
      %s189 = sphi 0, %s186
      %s190 = sphi 0, %s189
      %s206 = sphi 0, %s190
    $region4: #{tpu_custom_call.1} parent=1 // loop_header_branch
      %26 = sbr.rel (%p24) target = $region8
    $region5: #{tpu_custom_call.1} parent=1 // loop_body
      %s28 = ssub.s32 %s23, 1
      %s29 = ssub.s32 %s23, 2
      %s36 = sadd.s32 1, %s31
      %p37 = scmp.ge.s32.totalorder %s36, 4
      %s38 = scalar_select %p37, 0, %s36
      %s39 = sadd.s32 1, %s30
      %s40 = scalar_select %p37, %s39, %s30
      %p41 = scmp.ge.s32.totalorder %s40, 2
      %s42 = scalar_select %p41, 0, %s40
      %s43 = ssub.s32 %s30, %s42
      %p44 = scmp.eq.s32.totalorder %s43, 0
      %s46 = sadd.s32 %s45, 1
      %s47 = scalar_select %p44, %s45, %s46
      %p50 = pneg %p44
      %p51 = scmp.eq.s32.totalorder %s23, 7
      %p52 = por %p50, %p51
      %p53 = scmp.ne.s32.totalorder %s45, %s48
      %p54 = scmp.eq.s32.totalorder %s23, 0
      %p55 = por %p53, %p54
      %p56 = scmp.ne.s32.totalorder %s45, %s48
      %p57 = scmp.eq.s32.totalorder %s28, 7
      %p58 = por %p56, %p57
      %p59 = scmp.ne.s32.totalorder %s48, %s49
      %p60 = scmp.eq.s32.totalorder %s28, 0
      %p61 = por %p59, %p60
      %p62 = scmp.ne.s32.totalorder %s48, %s49
      %p63 = scmp.eq.s32.totalorder %s29, 7
      %p64 = por %p62, %p63
      %p66 = scmp.ne.s32.totalorder %s49, %s65
      %p67 = scmp.eq.s32.totalorder %s29, 0
      %p68 = por %p66, %p67
      %s69 = ssub.s32 %s31, %s38
      %p70 = scmp.eq.s32.totalorder %s69, 0
      %s72 = sadd.s32 %s71, 1
      %s73 = scalar_select %p70, %s71, %s72
      %p76 = pneg %p70
      %p77 = scmp.eq.s32.totalorder %s23, 7
      %p78 = por %p76, %p77
      %p79 = scmp.ne.s32.totalorder %s71, %s74
      %p80 = scmp.eq.s32.totalorder %s23, 0
      %p81 = por %p79, %p80
      %p82 = scmp.ne.s32.totalorder %s71, %s74
      %p83 = scmp.eq.s32.totalorder %s28, 7
      %p84 = por %p82, %p83
      %p85 = scmp.ne.s32.totalorder %s74, %s75
      %p86 = scmp.eq.s32.totalorder %s28, 0
      %p87 = por %p85, %p86
      %p88 = scmp.ne.s32.totalorder %s74, %s75
      %p89 = scmp.eq.s32.totalorder %s29, 7
      %p90 = por %p88, %p89
      %p92 = scmp.ne.s32.totalorder %s75, %s91
      %p93 = scmp.eq.s32.totalorder %s29, 0
      %p94 = por %p92, %p93
      %s95 = ssub.s32 %s31, %s38
      %p96 = scmp.eq.s32.totalorder %s95, 0
      %s98 = sadd.s32 %s97, 1
      %s99 = scalar_select %p96, %s97, %s98
      %p102 = pneg %p96
      %p103 = scmp.eq.s32.totalorder %s23, 7
      %p104 = por %p102, %p103
      %p105 = scmp.ne.s32.totalorder %s97, %s100
      %p106 = scmp.eq.s32.totalorder %s23, 0
      %p107 = por %p105, %p106
      %p108 = scmp.ne.s32.totalorder %s97, %s100
      %p109 = scmp.eq.s32.totalorder %s28, 7
      %p110 = por %p108, %p109
      %p111 = scmp.ne.s32.totalorder %s100, %s101
      %p112 = scmp.eq.s32.totalorder %s28, 0
      %p113 = por %p111, %p112
      %p114 = scmp.ne.s32.totalorder %s100, %s101
      %p115 = scmp.eq.s32.totalorder %s29, 7
      %p116 = por %p114, %p115
      %p118 = scmp.ne.s32.totalorder %s101, %s117
      %p119 = scmp.eq.s32.totalorder %s29, 0
      %p120 = por %p118, %p119
      %s122 = sadd.s32 %s121, 1
      %p125 = scmp.eq.s32.totalorder %s23, 7
      %p126 = scmp.ne.s32.totalorder %s121, %s123
      %p127 = scmp.eq.s32.totalorder %s23, 0
      %p128 = por %p126, %p127
      %p129 = scmp.ne.s32.totalorder %s121, %s123
      %p130 = scmp.eq.s32.totalorder %s28, 7
      %p131 = por %p129, %p130
      %p132 = scmp.ne.s32.totalorder %s123, %s124
      %p133 = scmp.eq.s32.totalorder %s28, 0
      %p134 = por %p132, %p133
      %p135 = scmp.ne.s32.totalorder %s123, %s124
      %p136 = scmp.eq.s32.totalorder %s29, 7
      %p137 = por %p135, %p136
      %p139 = scmp.ne.s32.totalorder %s124, %s138
      %p140 = scmp.eq.s32.totalorder %s29, 0
      %p141 = por %p139, %p140
      %s143 = sadd.s32 %s142, 1
      %p146 = scmp.eq.s32.totalorder %s23, 7
      %p147 = scmp.ne.s32.totalorder %s142, %s144
      %p148 = scmp.eq.s32.totalorder %s23, 0
      %p149 = por %p147, %p148
      %p150 = scmp.ne.s32.totalorder %s142, %s144
      %p151 = scmp.eq.s32.totalorder %s28, 7
      %p152 = por %p150, %p151
      %p153 = scmp.ne.s32.totalorder %s144, %s145
      %p154 = scmp.eq.s32.totalorder %s28, 0
      %p155 = por %p153, %p154
      %p156 = scmp.ne.s32.totalorder %s144, %s145
      %p157 = scmp.eq.s32.totalorder %s29, 7
      %p158 = por %p156, %p157
      %p160 = scmp.ne.s32.totalorder %s145, %s159
      %p161 = scmp.eq.s32.totalorder %s29, 0
      %p162 = por %p160, %p161
      %s164 = sadd.s32 %s163, 1
      %p167 = scmp.eq.s32.totalorder %s23, 7
      %p168 = scmp.ne.s32.totalorder %s163, %s165
      %p169 = scmp.eq.s32.totalorder %s23, 0
      %p170 = por %p168, %p169
      %p171 = scmp.ne.s32.totalorder %s163, %s165
      %p172 = scmp.eq.s32.totalorder %s28, 7
      %p173 = por %p171, %p172
      %p174 = scmp.ne.s32.totalorder %s165, %s166
      %p175 = scmp.eq.s32.totalorder %s28, 0
      %p176 = por %p174, %p175
      %p177 = scmp.ne.s32.totalorder %s165, %s166
      %p178 = scmp.eq.s32.totalorder %s29, 7
      %p179 = por %p177, %p178
      %p181 = scmp.ne.s32.totalorder %s166, %s180
      %p182 = scmp.eq.s32.totalorder %s29, 0
      %p183 = por %p181, %p182
      %s184 = ssub.s32 %s30, %s42
      %p185 = scmp.eq.s32.totalorder %s184, 0
      %s187 = sadd.s32 %s186, 1
      %s188 = scalar_select %p185, %s186, %s187
      %p191 = pneg %p185
      %p192 = scmp.eq.s32.totalorder %s23, 7
      %p193 = por %p191, %p192
      %p194 = scmp.ne.s32.totalorder %s186, %s189
      %p195 = scmp.eq.s32.totalorder %s23, 0
      %p196 = por %p194, %p195
      %p197 = scmp.ne.s32.totalorder %s186, %s189
      %p198 = scmp.eq.s32.totalorder %s28, 7
      %p199 = por %p197, %p198
      %p200 = scmp.ne.s32.totalorder %s189, %s190
      %p201 = scmp.eq.s32.totalorder %s28, 0
      %p202 = por %p200, %p201
      %p203 = scmp.ne.s32.totalorder %s189, %s190
      %p204 = scmp.eq.s32.totalorder %s29, 7
      %p205 = por %p203, %p204
      %p207 = scmp.ne.s32.totalorder %s190, %s206
      %p208 = scmp.eq.s32.totalorder %s29, 0
      %p209 = por %p207, %p208
      %p210 = scmp.le.s32.totalorder 1, %s23
      %p211 = scmp.lt.s32.totalorder %s23, 9
      %p212 = pnand %p210, %p211
      %p213 = pneg %p212
      // Predicated region
      $region9: #{tpu_custom_call.1} parent=5 // pred_check
        _
      $region10: #{tpu_custom_call.1} parent=5 // pred_check_branch
        %215 = sbr.rel (%p212) target = $region12
      $region11: #{tpu_custom_call.1} parent=5 // pred_region
        %s216 = ssub.s32 %s23, 1
        // Predicated region
        $region13: #{tpu_custom_call.1} parent=11 // pred_check
          %p217 = pneg %p134
        $region14: #{tpu_custom_call.1} parent=11 // pred_check_branch
          %219 = sbr.rel (%p217) target = $region16
        $region15: #{tpu_custom_call.1} parent=11 // pred_region
          %s221 = ssub.s32 64, 64
          %222 = vsyncadd [#allocation11], %s221
          %s224 = sshll.u32 [#allocation10], 4
          %s225 = int_to_ptr.vmem [resolvable:$true] %s224
          %227 = dma.hbm_to_vmem [thread:$0]  %s3, 64, %s225, [#allocation11]
        $region16: #{tpu_custom_call.1} parent=11 // pred_fallthru
          _
        // Predicated region
        $region17: #{tpu_custom_call.1} parent=11 // pred_check
          %p228 = pneg %p155
        $region18: #{tpu_custom_call.1} parent=11 // pred_check_branch
          %230 = sbr.rel (%p228) target = $region20
        $region19: #{tpu_custom_call.1} parent=11 // pred_region
          %s232 = ssub.s32 64, 64
          %233 = vsyncadd [#allocation11], %s232
          %s235 = sshll.u32 [#allocation12], 4
          %s236 = int_to_ptr.vmem [resolvable:$true] %s235
          %238 = dma.hbm_to_vmem [thread:$0]  %s4, 64, %s236, [#allocation11]
        $region20: #{tpu_custom_call.1} parent=11 // pred_fallthru
          _
        // Predicated region
        $region21: #{tpu_custom_call.1} parent=11 // pred_check
          %p239 = pneg %p176
        $region22: #{tpu_custom_call.1} parent=11 // pred_check_branch
          %241 = sbr.rel (%p239) target = $region24
        $region23: #{tpu_custom_call.1} parent=11 // pred_region
          %s243 = ssub.s32 64, 64
          %244 = vsyncadd [#allocation14], %s243
          %s246 = sshll.u32 [#allocation13], 4
          %s247 = int_to_ptr.vmem [resolvable:$true] %s246
          %249 = dma.hbm_to_vmem [thread:$0]  %s5, 64, %s247, [#allocation14]
        $region24: #{tpu_custom_call.1} parent=11 // pred_fallthru
          _
      $region12: #{tpu_custom_call.1} parent=5 // pred_fallthru
        _
      %p250 = scmp.lt.s32.totalorder %s23, 8
      // Predicated region
      $region25: #{tpu_custom_call.1} parent=5 // pred_check
        %p251 = pneg %p250
      $region26: #{tpu_custom_call.1} parent=5 // pred_check_branch
        %253 = sbr.rel (%p251) target = $region28
      $region27: #{tpu_custom_call.1} parent=5 // pred_region
        // Predicated region
        $region29: #{tpu_custom_call.1} parent=27 // pred_check
          %p254 = pneg %p55
        $region30: #{tpu_custom_call.1} parent=27 // pred_check_branch
          %256 = sbr.rel (%p254) target = $region32
        $region31: #{tpu_custom_call.1} parent=27 // pred_region
          %s257 = sand.u32 %s45, 1
          %s258 = scalar_lea.sflag [#allocation5], %s257
          %s259 = sand.u32 %s45, 1
          %s260 = smul.addr %s259, 8
          %s261 = scalar_lea.vmem [#allocation4], %s260
          %s263 = ssub.s32 128, 128
          %264 = vsyncadd %s258, %s263
          %s265 = smul.addr %s30, 2
          %s266 = smul.addr %s265, 64
          %s267 = scalar_lea.hbm %s0, %s266
          %s269 = sshll.u32 %s261, 4
          %s270 = int_to_ptr.vmem [resolvable:$true] %s269
          %272 = dma.hbm_to_vmem [thread:$0]  %s267, 128, %s270, %s258
        $region32: #{tpu_custom_call.1} parent=27 // pred_fallthru
          _
        // Predicated region
        $region33: #{tpu_custom_call.1} parent=27 // pred_check
          %p273 = pneg %p81
        $region34: #{tpu_custom_call.1} parent=27 // pred_check_branch
          %275 = sbr.rel (%p273) target = $region36
        $region35: #{tpu_custom_call.1} parent=27 // pred_region
          #allocation17 [shape = 'u32[6]{0}', space=smem, size = 0x18, scoped, tag = 'DMA stride descriptor']
          %s276 = sand.u32 %s23, 1
          %s277 = scalar_lea.sflag [#allocation8], %s276
          %s278 = sand.u32 %s71, 1
          %s279 = smul.addr %s278, 96
          %s280 = scalar_lea.vmem [#allocation7], %s279
          %s282 = ssub.s32 1536, 1536
          %283 = vsyncadd %s277, %s282
          %s284 = smul.addr %s31, 4
          %s285 = smul.addr %s284, 128
          %s286 = scalar_lea.hbm %s1, %s285
          %s288 = sshll.u32 1, 14
          %s289 = sxor.u32 4294967295, %s288
          %s291 = sld [smem:[#allocation0]]
          %s292 = sadd.s32 2, %s291
          %s294 = sshll.u32 7, 26
          %s295 = sxor.u32 4294967295, %s294
          %s296 = sand.u32 0, %s295
          %s297 = sshll.u32 %s292, 26
          %s298 = sor.u32 %s296, %s297
          %s299 = sshll.u32 %s280, 4
          %s300 = int_to_ptr.vmem [resolvable:$true] %s299
          %306 = sst [smem:[#allocation17]] 2048
          %s307 = scalar_lea.smem [#allocation17], 1
          %308 = sst [smem:[%s307]] 512
          %s309 = scalar_lea.smem [#allocation17], 2
          %310 = sst [smem:[%s309]] 4
          %s311 = scalar_lea.smem [#allocation17], 3
          %312 = sst [smem:[%s311]] 128
          %s313 = scalar_lea.smem [#allocation17], 4
          %314 = sst [smem:[%s313]] 128
          %s315 = scalar_lea.smem [#allocation17], 5
          %316 = sst [smem:[%s315]] 8
          %318 = dma.general %s286, 1536, %s300, %s277, [#allocation16], [#allocation17], %s298, 0
        $region36: #{tpu_custom_call.1} parent=27 // pred_fallthru
          _
        // Predicated region
        $region37: #{tpu_custom_call.1} parent=27 // pred_check
          %p319 = pneg %p107
        $region38: #{tpu_custom_call.1} parent=27 // pred_check_branch
          %321 = sbr.rel (%p319) target = $region40
        $region39: #{tpu_custom_call.1} parent=27 // pred_region
          %s322 = sand.u32 %s23, 1
          %s323 = scalar_lea.sflag [#allocation8], %s322
          %s324 = sand.u32 %s97, 1
          %s325 = smul.addr %s324, 4
          %s326 = scalar_lea.vmem [#allocation9], %s325
          %s328 = ssub.s32 64, 64
          %329 = vsyncadd %s323, %s328
          %s330 = smul.addr %s31, 64
          %s331 = scalar_lea.hbm %s2, %s330
          %s333 = sshll.u32 %s326, 4
          %s334 = int_to_ptr.vmem [resolvable:$true] %s333
          %336 = dma.hbm_to_vmem [thread:$0]  %s331, 64, %s334, %s323
        $region40: #{tpu_custom_call.1} parent=27 // pred_fallthru
          _
      $region28: #{tpu_custom_call.1} parent=5 // pred_fallthru
        _
      %p337 = scmp.le.s32.totalorder 1, %s23
      %p338 = scmp.lt.s32.totalorder %s23, 9
      %p339 = pnand %p337, %p338
      %p340 = pneg %p339
      // Predicated region
      $region41: #{tpu_custom_call.1} parent=5 // pred_check
        _
      $region42: #{tpu_custom_call.1} parent=5 // pred_check_branch
        %342 = sbr.rel (%p339) target = $region44
      $region43: #{tpu_custom_call.1} parent=5 // pred_region
        %s343 = ssub.s32 %s23, 1
        %s344 = sand.u32 %s48, 1
        %s345 = scalar_lea.sflag [#allocation5], %s344
        %s346 = sand.u32 %s48, 1
        %s347 = smul.addr %s346, 8
        %s348 = scalar_lea.vmem [#allocation4], %s347
        // Predicated region
        $region45: #{tpu_custom_call.1} parent=43 // pred_check
          %p349 = pneg %p61
        $region46: #{tpu_custom_call.1} parent=43 // pred_check_branch
          %351 = sbr.rel (%p349) target = $region48
        $region47: #{tpu_custom_call.1} parent=43 // pred_region
          %352 = dma.done %s345, 128
        $region48: #{tpu_custom_call.1} parent=43 // pred_fallthru
          _
        %s353 = sand.u32 %s28, 1
        %s354 = scalar_lea.sflag [#allocation8], %s353
        %s355 = sand.u32 %s74, 1
        %s356 = smul.addr %s355, 96
        %s357 = scalar_lea.vmem [#allocation7], %s356
        // Predicated region
        $region49: #{tpu_custom_call.1} parent=43 // pred_check
          %p358 = pneg %p87
        $region50: #{tpu_custom_call.1} parent=43 // pred_check_branch
          %360 = sbr.rel (%p358) target = $region52
        $region51: #{tpu_custom_call.1} parent=43 // pred_region
          %361 = dma.done %s354, 1536
        $region52: #{tpu_custom_call.1} parent=43 // pred_fallthru
          _
        %s362 = sand.u32 %s28, 1
        %s363 = scalar_lea.sflag [#allocation8], %s362
        %s364 = sand.u32 %s100, 1
        %s365 = smul.addr %s364, 4
        %s366 = scalar_lea.vmem [#allocation9], %s365
        // Predicated region
        $region53: #{tpu_custom_call.1} parent=43 // pred_check
          %p367 = pneg %p113
        $region54: #{tpu_custom_call.1} parent=43 // pred_check_branch
          %369 = sbr.rel (%p367) target = $region56
        $region55: #{tpu_custom_call.1} parent=43 // pred_region
          %370 = dma.done %s363, 64
        $region56: #{tpu_custom_call.1} parent=43 // pred_fallthru
          _
        // Predicated region
        $region57: #{tpu_custom_call.1} parent=43 // pred_check
          %p371 = pneg %p134
        $region58: #{tpu_custom_call.1} parent=43 // pred_check_branch
          %373 = sbr.rel (%p371) target = $region60
        $region59: #{tpu_custom_call.1} parent=43 // pred_region
          %374 = dma.done [#allocation11], 64
        $region60: #{tpu_custom_call.1} parent=43 // pred_fallthru
          _
        // Predicated region
        $region61: #{tpu_custom_call.1} parent=43 // pred_check
          %p375 = pneg %p155
        $region62: #{tpu_custom_call.1} parent=43 // pred_check_branch
          %377 = sbr.rel (%p375) target = $region64
        $region63: #{tpu_custom_call.1} parent=43 // pred_region
          %378 = dma.done [#allocation11], 64
        $region64: #{tpu_custom_call.1} parent=43 // pred_fallthru
          _
        // Predicated region
        $region65: #{tpu_custom_call.1} parent=43 // pred_check
          %p379 = pneg %p176
        $region66: #{tpu_custom_call.1} parent=43 // pred_check_branch
          %381 = sbr.rel (%p379) target = $region68
        $region67: #{tpu_custom_call.1} parent=43 // pred_region
          %382 = dma.done [#allocation14], 64
        $region68: #{tpu_custom_call.1} parent=43 // pred_fallthru
          _
        %s383 = sand.u32 %s48, 1
        %s384 = scalar_lea.sflag [#allocation5], %s383
        %s385 = sand.u32 %s48, 1
        %s386 = smul.addr %s385, 8
        %s387 = scalar_lea.vmem [#allocation4], %s386
        %p388 = pneg %p61
        %p389 = pneg %p58
        %s390 = sand.u32 %s28, 1
        %s391 = scalar_lea.sflag [#allocation8], %s390
        %s392 = sand.u32 %s74, 1
        %s393 = smul.addr %s392, 96
        %s394 = scalar_lea.vmem [#allocation7], %s393
        %p395 = pneg %p87
        %p396 = pneg %p84
        %s397 = sand.u32 %s28, 1
        %s398 = scalar_lea.sflag [#allocation8], %s397
        %s399 = sand.u32 %s100, 1
        %s400 = smul.addr %s399, 4
        %s401 = scalar_lea.vmem [#allocation9], %s400
        %p402 = pneg %p113
        %p403 = pneg %p110
        %p404 = pneg %p134
        %p405 = pneg %p131
        %p406 = pneg %p155
        %p407 = pneg %p152
        %p408 = pneg %p176
        %p409 = pneg %p173
        %p410 = pneg %p202
        %p411 = pneg %p199
        %s412 = sand.u32 %s189, 1
        %s413 = scalar_lea.sflag [#allocation6], %s412
        %s414 = sand.u32 %s189, 1
        %s415 = smul.addr %s414, 8
        %s416 = scalar_lea.vmem [#allocation15], %s415
        %p417 = scmp.eq.s32.totalorder %s33, 0
        // Predicated region
        $region69: #{tpu_custom_call.1} parent=43 // pred_check
          %p418 = pneg %p417
        $region70: #{tpu_custom_call.1} parent=43 // pred_check_branch
          %420 = sbr.rel (%p418) target = $region72
        $region71: #{tpu_custom_call.1} parent=43 // pred_region
          %v421 = vld [vmem:[%s348] sm:$0xff]
          %v422 = vmul.f32 %v421, %v421
          %v424 = vcombine.high %v422, %v422
          %vm426 = vcmask 1043456
          %v427 = vsel %vm426, %v422, 0.0
          %v428 = vrot.slane %v427, 4
          %v429 = vadd.f32 %v427, %v428
          %v430 = vrot.slane %v429, 2
          %v431 = vadd.f32 %v429, %v430
          %v432 = vrot.slane %v431, 1
          %v433 = vadd.f32 %v431, %v432
          %v434 = vsel %vm426, %v424, 0.0
          %v435 = vrot.slane %v434, 4
          %v436 = vadd.f32 %v434, %v435
          %v437 = vrot.slane %v436, 2
          %v438 = vadd.f32 %v436, %v437
          %v439 = vrot.slane %v438, 1
          %v440 = vadd.f32 %v438, %v439
          %v441 = vmax.f32 %v433, 1e-24
          %v442 = vmax.f32 %v440, 1e-24
          %v443 = vrsqrt.pop %v441
          %v444 = vrsqrt.pop %v442
          %v447 = vcombine.low %v443, %v444
          %v449 = vmul.f32 %v421, %v447
          %v450 = vld [vmem:[#allocation12] sm:$0xf]
          %v451 = vmul.f32 %v450, 2.0
          %453 = vset.pattern.permute.xlu0 0
          %454 = vperm.xlu0 %453, %v451
          %v455 = vpop.permute.xlu0 %454
          %v457 = vunpack.c.l.s4 839922192
          %v458 = vunpack.c.0.s8 %v457
          %v459 = vlaneseq
          %v460 = vshrl.u32 %v459, 7
          %v461 = vsub.s32 %v458, %v460
          %v462 = vrot.slane %v455, %v461
          %v464 = vmul.f32 %v449, %v462
          %465 = vst [vmem:[#allocation2] sm:$0xff] %v464
          %466 = vst [vmem:[#allocation3] sm:$0xff] 0.0
        $region72: #{tpu_custom_call.1} parent=43 // pred_fallthru
          _
        %v467 = vld [vmem:[#allocation2] sm:$0xff]
        %v468 = vld [vmem:[%s357] sm:$0xff]
        %v469 = vld [vmem:[%s357 + $0x8] sm:$0xff]
        %v470 = vld [vmem:[%s357 + $0x10] sm:$0xff]
        %v471 = vld [vmem:[%s357 + $0x18] sm:$0xff]
        %v473 = vcombine.high %v467, %v467
        %vm474 = vcmask 31744
        %v476 = vsel %vm474, %v468, 0
        %v479 = vsel %vm474, %v469, 0
        %v482 = vsel %vm474, %v470, 0
        %v485 = vsel %vm474, %v471, 0
        %vm487 = vcmask 1043456
        %v488 = vsel %vm487, %v467, 0
        %v490 = vsel %vm487, %v473, 0
        %492 = vmatprep.subr.mxu0 %v490
        %493 = vmatpush1.msra.mxu0 %v488
        %494 = vmatprep.subr.mxu0 0.0
        %495 = vmatpush1.msra.mxu0 0.0
        %496 = vmatprep.subr.mxu0 0.0
        %497 = vmatpush1.msra.mxu0 0.0
        %498 = vmatprep.subr.mxu0 0.0
        %499 = vmatpush1.msra.mxu0 0.0
        %500 = vmatprep.subr.mxu0 0.0
        %501 = vmatpush1.msra.mxu0 0.0
        %502 = vmatprep.subr.mxu0 0.0
        %503 = vmatpush1.msra.mxu0 0.0
        %504 = vmatprep.subr.mxu0 0.0
        %505 = vmatpush1.msra.mxu0 0.0
        %506 = vmatprep.subr.mxu0 0.0
        %507 = vmatpush1.msra.mxu0 0.0
        %508 = vmatprep.subr.mxu0 0.0
        %509 = vmatpush1.msra.mxu0 0.0
        %510 = vmatprep.subr.mxu0 0.0
        %511 = vmatpush1.msra.mxu0 0.0
        %512 = vmatprep.subr.mxu0 0.0
        %513 = vmatpush1.msra.mxu0 0.0
        %514 = vmatprep.subr.mxu0 0.0
        %515 = vmatpush1.msra.mxu0 0.0
        %516 = vmatprep.subr.mxu0 0.0
        %517 = vmatpush1.msra.mxu0 0.0
        %518 = vmatprep.subr.mxu0 0.0
        %519 = vmatpush1.msra.mxu0 0.0
        %520 = vmatprep.subr.mxu0 0.0
        %521 = vmatpush1.msra.mxu0 0.0
        %522 = vmatprep.subr.mxu0 0.0
        %523 = vmatpush1.msra.mxu0 0.0
        %524 = vmatprep.subr.mxu0 0.0
        %525 = vmatpush1.msra.mxu0 0.0
        %526 = vmatprep.subr.mxu0 0.0
        %527 = vmatpush1.msra.mxu0 0.0
        %528 = vmatprep.subr.mxu0 0.0
        %529 = vmatpush1.msra.mxu0 0.0
        %530 = vmatprep.subr.mxu0 0.0
        %531 = vmatpush1.msra.mxu0 0.0
        %532 = vmatprep.subr.mxu0 0.0
        %533 = vmatpush1.msra.mxu0 0.0
        %534 = vmatprep.subr.mxu0 0.0
        %535 = vmatpush1.msra.mxu0 0.0
        %536 = vmatprep.subr.mxu0 0.0
        %537 = vmatpush1.msra.mxu0 0.0
        %538 = vmatprep.subr.mxu0 0.0
        %539 = vmatpush1.msra.mxu0 0.0
        %540 = vmatprep.subr.mxu0 0.0
        %541 = vmatpush1.msra.mxu0 0.0
        %542 = vmatprep.subr.mxu0 0.0
        %543 = vmatpush1.msra.mxu0 0.0
        %544 = vmatprep.subr.mxu0 0.0
        %545 = vmatpush1.msra.mxu0 0.0
        %546 = vmatprep.subr.mxu0 0.0
        %547 = vmatpush1.msra.mxu0 0.0
        %548 = vmatprep.subr.mxu0 0.0
        %549 = vmatpush1.msra.mxu0 0.0
        %550 = vmatprep.subr.mxu0 0.0
        %551 = vmatpush1.msra.mxu0 0.0
        %552 = vmatprep.subr.mxu0 0.0
        %553 = vmatpush1.msra.mxu0 0.0
        %554 = vmatprep.subr.mxu0 0.0
        %555 = vmatpush1.msra.mxu0 0.0
        %556 = vmatprep.mubr.f32.mxu0 0.0
        %557 = vmatmul.mubr.f32.gmra.mrb[0].mxu0 %v476
        %v558 = vpop.f32.mrb[0].mxu0
        %v559 = vadd.f32 0.0, %v558
        %v560 = vpop.f32.mrb[0].mxu0
        %v561 = vadd.f32 0.0, %v560
        %562 = vmatprep.mubr.f32.mxu0 0.0
        %563 = vmatmul.mubr.f32.gmra.mrb[0].mxu0 %v479
        %v564 = vpop.f32.mrb[0].mxu0
        %v565 = vadd.f32 0.0, %v564
        %v566 = vpop.f32.mrb[0].mxu0
        %v567 = vadd.f32 0.0, %v566
        %568 = vmatprep.mubr.f32.mxu0 0.0
        %569 = vmatmul.mubr.f32.gmra.mrb[0].mxu0 %v482
        %v570 = vpop.f32.mrb[0].mxu0
        %v571 = vadd.f32 0.0, %v570
        %v572 = vpop.f32.mrb[0].mxu0
        %v573 = vadd.f32 0.0, %v572
        %574 = vmatprep.mubr.f32.mxu0 0.0
        %575 = vmatmul.mubr.f32.gmra.mrb[0].mxu0 %v485
        %v576 = vpop.f32.mrb[0].mxu0
        %v577 = vadd.f32 0.0, %v576
        %v578 = vpop.f32.mrb[0].mxu0
        %v579 = vadd.f32 0.0, %v578
        %580 = vdwg.mxu0
        %s581 = scalar_lea.vmem %s357, 32 [#allocation7]
        %v582 = vld [vmem:[%s581] sm:$0xff]
        %v583 = vld [vmem:[%s581 + $0x8] sm:$0xff]
        %v584 = vld [vmem:[%s581 + $0x10] sm:$0xff]
        %v585 = vld [vmem:[%s581 + $0x18] sm:$0xff]
        %v587 = vsel %vm474, %v582, 0
        %v590 = vsel %vm474, %v583, 0
        %v593 = vsel %vm474, %v584, 0
        %v596 = vsel %vm474, %v585, 0
        %598 = vmatprep.subr.mxu0 %v490
        %599 = vmatpush1.msra.mxu0 %v488
        %600 = vmatprep.subr.mxu0 0.0
        %601 = vmatpush1.msra.mxu0 0.0
        %602 = vmatprep.subr.mxu0 0.0
        %603 = vmatpush1.msra.mxu0 0.0
        %604 = vmatprep.subr.mxu0 0.0
        %605 = vmatpush1.msra.mxu0 0.0
        %606 = vmatprep.subr.mxu0 0.0
        %607 = vmatpush1.msra.mxu0 0.0
        %608 = vmatprep.subr.mxu0 0.0
        %609 = vmatpush1.msra.mxu0 0.0
        %610 = vmatprep.subr.mxu0 0.0
        %611 = vmatpush1.msra.mxu0 0.0
        %612 = vmatprep.subr.mxu0 0.0
        %613 = vmatpush1.msra.mxu0 0.0
        %614 = vmatprep.subr.mxu0 0.0
        %615 = vmatpush1.msra.mxu0 0.0
        %616 = vmatprep.subr.mxu0 0.0
        %617 = vmatpush1.msra.mxu0 0.0
        %618 = vmatprep.subr.mxu0 0.0
        %619 = vmatpush1.msra.mxu0 0.0
        %620 = vmatprep.subr.mxu0 0.0
        %621 = vmatpush1.msra.mxu0 0.0
        %622 = vmatprep.subr.mxu0 0.0
        %623 = vmatpush1.msra.mxu0 0.0
        %624 = vmatprep.subr.mxu0 0.0
        %625 = vmatpush1.msra.mxu0 0.0
        %626 = vmatprep.subr.mxu0 0.0
        %627 = vmatpush1.msra.mxu0 0.0
        %628 = vmatprep.subr.mxu0 0.0
        %629 = vmatpush1.msra.mxu0 0.0
        %630 = vmatprep.subr.mxu0 0.0
        %631 = vmatpush1.msra.mxu0 0.0
        %632 = vmatprep.subr.mxu0 0.0
        %633 = vmatpush1.msra.mxu0 0.0
        %634 = vmatprep.subr.mxu0 0.0
        %635 = vmatpush1.msra.mxu0 0.0
        %636 = vmatprep.subr.mxu0 0.0
        %637 = vmatpush1.msra.mxu0 0.0
        %638 = vmatprep.subr.mxu0 0.0
        %639 = vmatpush1.msra.mxu0 0.0
        %640 = vmatprep.subr.mxu0 0.0
        %641 = vmatpush1.msra.mxu0 0.0
        %642 = vmatprep.subr.mxu0 0.0
        %643 = vmatpush1.msra.mxu0 0.0
        %644 = vmatprep.subr.mxu0 0.0
        %645 = vmatpush1.msra.mxu0 0.0
        %646 = vmatprep.subr.mxu0 0.0
        %647 = vmatpush1.msra.mxu0 0.0
        %648 = vmatprep.subr.mxu0 0.0
        %649 = vmatpush1.msra.mxu0 0.0
        %650 = vmatprep.subr.mxu0 0.0
        %651 = vmatpush1.msra.mxu0 0.0
        %652 = vmatprep.subr.mxu0 0.0
        %653 = vmatpush1.msra.mxu0 0.0
        %654 = vmatprep.subr.mxu0 0.0
        %655 = vmatpush1.msra.mxu0 0.0
        %656 = vmatprep.subr.mxu0 0.0
        %657 = vmatpush1.msra.mxu0 0.0
        %658 = vmatprep.subr.mxu0 0.0
        %659 = vmatpush1.msra.mxu0 0.0
        %660 = vmatprep.subr.mxu0 0.0
        %661 = vmatpush1.msra.mxu0 0.0
        %662 = vmatprep.mubr.f32.mxu0 0.0
        %663 = vmatmul.mubr.f32.gmra.mrb[0].mxu0 %v587
        %v664 = vpop.f32.mrb[0].mxu0
        %v665 = vadd.f32 0.0, %v664
        %v666 = vpop.f32.mrb[0].mxu0
        %v667 = vadd.f32 0.0, %v666
        %668 = vmatprep.mubr.f32.mxu0 0.0
        %669 = vmatmul.mubr.f32.gmra.mrb[0].mxu0 %v590
        %v670 = vpop.f32.mrb[0].mxu0
        %v671 = vadd.f32 0.0, %v670
        %v672 = vpop.f32.mrb[0].mxu0
        %v673 = vadd.f32 0.0, %v672
        %674 = vmatprep.mubr.f32.mxu0 0.0
        %675 = vmatmul.mubr.f32.gmra.mrb[0].mxu0 %v593
        %v676 = vpop.f32.mrb[0].mxu0
        %v677 = vadd.f32 0.0, %v676
        %v678 = vpop.f32.mrb[0].mxu0
        %v679 = vadd.f32 0.0, %v678
        %680 = vmatprep.mubr.f32.mxu0 0.0
        %681 = vmatmul.mubr.f32.gmra.mrb[0].mxu0 %v596
        %v682 = vpop.f32.mrb[0].mxu0
        %v683 = vadd.f32 0.0, %v682
        %v684 = vpop.f32.mrb[0].mxu0
        %v685 = vadd.f32 0.0, %v684
        %686 = vdwg.mxu0
        %s687 = scalar_lea.vmem %s357, 64 [#allocation7]
        %v688 = vld [vmem:[%s687] sm:$0xff]
        %v689 = vld [vmem:[%s687 + $0x8] sm:$0xff]
        %v690 = vld [vmem:[%s687 + $0x10] sm:$0xff]
        %v691 = vld [vmem:[%s687 + $0x18] sm:$0xff]
        %v693 = vsel %vm474, %v688, 0
        %v696 = vsel %vm474, %v689, 0
        %v699 = vsel %vm474, %v690, 0
        %v702 = vsel %vm474, %v691, 0
        %704 = vmatprep.subr.mxu0 %v490
        %705 = vmatpush1.msra.mxu0 %v488
        %706 = vmatprep.subr.mxu0 0.0
        %707 = vmatpush1.msra.mxu0 0.0
        %708 = vmatprep.subr.mxu0 0.0
        %709 = vmatpush1.msra.mxu0 0.0
        %710 = vmatprep.subr.mxu0 0.0
        %711 = vmatpush1.msra.mxu0 0.0
        %712 = vmatprep.subr.mxu0 0.0
        %713 = vmatpush1.msra.mxu0 0.0
        %714 = vmatprep.subr.mxu0 0.0
        %715 = vmatpush1.msra.mxu0 0.0
        %716 = vmatprep.subr.mxu0 0.0
        %717 = vmatpush1.msra.mxu0 0.0
        %718 = vmatprep.subr.mxu0 0.0
        %719 = vmatpush1.msra.mxu0 0.0
        %720 = vmatprep.subr.mxu0 0.0
        %721 = vmatpush1.msra.mxu0 0.0
        %722 = vmatprep.subr.mxu0 0.0
        %723 = vmatpush1.msra.mxu0 0.0
        %724 = vmatprep.subr.mxu0 0.0
        %725 = vmatpush1.msra.mxu0 0.0
        %726 = vmatprep.subr.mxu0 0.0
        %727 = vmatpush1.msra.mxu0 0.0
        %728 = vmatprep.subr.mxu0 0.0
        %729 = vmatpush1.msra.mxu0 0.0
        %730 = vmatprep.subr.mxu0 0.0
        %731 = vmatpush1.msra.mxu0 0.0
        %732 = vmatprep.subr.mxu0 0.0
        %733 = vmatpush1.msra.mxu0 0.0
        %734 = vmatprep.subr.mxu0 0.0
        %735 = vmatpush1.msra.mxu0 0.0
        %736 = vmatprep.subr.mxu0 0.0
        %737 = vmatpush1.msra.mxu0 0.0
        %738 = vmatprep.subr.mxu0 0.0
        %739 = vmatpush1.msra.mxu0 0.0
        %740 = vmatprep.subr.mxu0 0.0
        %741 = vmatpush1.msra.mxu0 0.0
        %742 = vmatprep.subr.mxu0 0.0
        %743 = vmatpush1.msra.mxu0 0.0
        %744 = vmatprep.subr.mxu0 0.0
        %745 = vmatpush1.msra.mxu0 0.0
        %746 = vmatprep.subr.mxu0 0.0
        %747 = vmatpush1.msra.mxu0 0.0
        %748 = vmatprep.subr.mxu0 0.0
        %749 = vmatpush1.msra.mxu0 0.0
        %750 = vmatprep.subr.mxu0 0.0
        %751 = vmatpush1.msra.mxu0 0.0
        %752 = vmatprep.subr.mxu0 0.0
        %753 = vmatpush1.msra.mxu0 0.0
        %754 = vmatprep.subr.mxu0 0.0
        %755 = vmatpush1.msra.mxu0 0.0
        %756 = vmatprep.subr.mxu0 0.0
        %757 = vmatpush1.msra.mxu0 0.0
        %758 = vmatprep.subr.mxu0 0.0
        %759 = vmatpush1.msra.mxu0 0.0
        %760 = vmatprep.subr.mxu0 0.0
        %761 = vmatpush1.msra.mxu0 0.0
        %762 = vmatprep.subr.mxu0 0.0
        %763 = vmatpush1.msra.mxu0 0.0
        %764 = vmatprep.subr.mxu0 0.0
        %765 = vmatpush1.msra.mxu0 0.0
        %766 = vmatprep.subr.mxu0 0.0
        %767 = vmatpush1.msra.mxu0 0.0
        %768 = vmatprep.mubr.f32.mxu0 0.0
        %769 = vmatmul.mubr.f32.gmra.mrb[0].mxu0 %v693
        %v770 = vpop.f32.mrb[0].mxu0
        %v771 = vadd.f32 0.0, %v770
        %v772 = vpop.f32.mrb[0].mxu0
        %v773 = vadd.f32 0.0, %v772
        %774 = vmatprep.mubr.f32.mxu0 0.0
        %775 = vmatmul.mubr.f32.gmra.mrb[0].mxu0 %v696
        %v776 = vpop.f32.mrb[0].mxu0
        %v777 = vadd.f32 0.0, %v776
        %v778 = vpop.f32.mrb[0].mxu0
        %v779 = vadd.f32 0.0, %v778
        %780 = vmatprep.mubr.f32.mxu0 0.0
        %781 = vmatmul.mubr.f32.gmra.mrb[0].mxu0 %v699
        %v782 = vpop.f32.mrb[0].mxu0
        %v783 = vadd.f32 0.0, %v782
        %v784 = vpop.f32.mrb[0].mxu0
        %v785 = vadd.f32 0.0, %v784
        %786 = vmatprep.mubr.f32.mxu0 0.0
        %787 = vmatmul.mubr.f32.gmra.mrb[0].mxu0 %v702
        %v788 = vpop.f32.mrb[0].mxu0
        %v789 = vadd.f32 0.0, %v788
        %v790 = vpop.f32.mrb[0].mxu0
        %v791 = vadd.f32 0.0, %v790
        %792 = vdwg.mxu0
        %v793 = vmax.f32 %v559, %v571
        %v794 = vmax.f32 %v565, %v577
        %v795 = vmax.f32 %v793, %v794
        %v796 = vrot.slane %v795, 4
        %v797 = vmax.f32 %v795, %v796
        %v798 = vrot.slane %v797, 2
        %v799 = vmax.f32 %v797, %v798
        %v800 = vrot.slane %v799, 1
        %v801 = vmax.f32 %v799, %v800
        %v802 = vmax.f32 %v561, %v573
        %v803 = vmax.f32 %v567, %v579
        %v804 = vmax.f32 %v802, %v803
        %v805 = vrot.slane %v804, 4
        %v806 = vmax.f32 %v804, %v805
        %v807 = vrot.slane %v806, 2
        %v808 = vmax.f32 %v806, %v807
        %v809 = vrot.slane %v808, 1
        %v810 = vmax.f32 %v808, %v809
        %v811 = vsub.f32 %v559, %v801
        %v812 = vsub.f32 %v561, %v810
        %v813 = vsub.f32 %v565, %v801
        %v814 = vsub.f32 %v567, %v810
        %v815 = vsub.f32 %v571, %v801
        %v816 = vsub.f32 %v573, %v810
        %v817 = vsub.f32 %v577, %v801
        %v818 = vsub.f32 %v579, %v810
        %v819 = vmul.f32 %v811, 1.442695
        %v820 = vpow.pop %v819
        %v821 = vmul.f32 %v812, 1.442695
        %v822 = vpow.pop %v821
        %v823 = vmul.f32 %v813, 1.442695
        %v824 = vpow.pop %v823
        %v825 = vmul.f32 %v814, 1.442695
        %v826 = vpow.pop %v825
        %v827 = vmul.f32 %v815, 1.442695
        %v828 = vpow.pop %v827
        %v829 = vmul.f32 %v816, 1.442695
        %v830 = vpow.pop %v829
        %v831 = vmul.f32 %v817, 1.442695
        %v832 = vpow.pop %v831
        %v833 = vmul.f32 %v818, 1.442695
        %v834 = vpow.pop %v833
        %v835 = vadd.f32 %v820, %v824
        %v836 = vadd.f32 %v835, %v828
        %v837 = vadd.f32 %v836, %v832
        %v838 = vrot.slane %v837, 4
        %v839 = vadd.f32 %v837, %v838
        %v840 = vrot.slane %v839, 2
        %v841 = vadd.f32 %v839, %v840
        %v842 = vrot.slane %v841, 1
        %v843 = vadd.f32 %v841, %v842
        %v844 = vadd.f32 %v822, %v826
        %v845 = vadd.f32 %v844, %v830
        %v846 = vadd.f32 %v845, %v834
        %v847 = vrot.slane %v846, 4
        %v848 = vadd.f32 %v846, %v847
        %v849 = vrot.slane %v848, 2
        %v850 = vadd.f32 %v848, %v849
        %v851 = vrot.slane %v850, 1
        %v852 = vadd.f32 %v850, %v851
        %v853 = vrcp.pop %v843
        %v854 = vmul.f32 0.17677669, %v853
        %v855 = vrcp.pop %v852
        %v856 = vmul.f32 0.17677669, %v855
        %v857 = vmul.f32 %v820, %v854
        %v858 = vmul.f32 %v822, %v856
        %v859 = vmul.f32 %v824, %v854
        %v860 = vmul.f32 %v826, %v856
        %v861 = vmul.f32 %v828, %v854
        %v862 = vmul.f32 %v830, %v856
        %v863 = vmul.f32 %v832, %v854
        %v864 = vmul.f32 %v834, %v856
        %v865 = vmax.f32 %v665, %v667
        %866 = vmax.xlane.f32.xlu0 %v865
        %v867 = vpop.xlane.xlu0 %866
        %v868 = vmax.f32 %v671, %v673
        %869 = vmax.xlane.f32.xlu0 %v868
        %v870 = vpop.xlane.xlu0 %869
        %v871 = vmax.f32 %v677, %v679
        %872 = vmax.xlane.f32.xlu0 %v871
        %v873 = vpop.xlane.xlu0 %872
        %v874 = vmax.f32 %v683, %v685
        %875 = vmax.xlane.f32.xlu0 %v874
        %v876 = vpop.xlane.xlu0 %875
        %v877 = vsub.f32 %v665, %v867
        %v878 = vsub.f32 %v667, %v867
        %v879 = vsub.f32 %v671, %v870
        %v880 = vsub.f32 %v673, %v870
        %v881 = vsub.f32 %v677, %v873
        %v882 = vsub.f32 %v679, %v873
        %v883 = vsub.f32 %v683, %v876
        %v884 = vsub.f32 %v685, %v876
        %v885 = vmul.f32 %v877, 1.442695
        %v886 = vpow.pop %v885
        %v887 = vmul.f32 %v878, 1.442695
        %v888 = vpow.pop %v887
        %v889 = vmul.f32 %v879, 1.442695
        %v890 = vpow.pop %v889
        %v891 = vmul.f32 %v880, 1.442695
        %v892 = vpow.pop %v891
        %v893 = vmul.f32 %v881, 1.442695
        %v894 = vpow.pop %v893
        %v895 = vmul.f32 %v882, 1.442695
        %v896 = vpow.pop %v895
        %v897 = vmul.f32 %v883, 1.442695
        %v898 = vpow.pop %v897
        %v899 = vmul.f32 %v884, 1.442695
        %v900 = vpow.pop %v899
        %v901 = vadd.f32 %v886, %v888
        %902 = vadd.xlane.f32.xlu0 %v901
        %v903 = vpop.xlane.xlu0 %902
        %v904 = vadd.f32 %v890, %v892
        %905 = vadd.xlane.f32.xlu0 %v904
        %v906 = vpop.xlane.xlu0 %905
        %v907 = vadd.f32 %v894, %v896
        %908 = vadd.xlane.f32.xlu0 %v907
        %v909 = vpop.xlane.xlu0 %908
        %v910 = vadd.f32 %v898, %v900
        %911 = vadd.xlane.f32.xlu0 %v910
        %v912 = vpop.xlane.xlu0 %911
        %v913 = vrcp.pop %v903
        %v914 = vmul.f32 %v886, %v913
        %v915 = vmul.f32 %v888, %v913
        %v916 = vrcp.pop %v906
        %v917 = vmul.f32 %v890, %v916
        %v918 = vmul.f32 %v892, %v916
        %v919 = vrcp.pop %v909
        %v920 = vmul.f32 %v894, %v919
        %v921 = vmul.f32 %v896, %v919
        %v922 = vrcp.pop %v912
        %v923 = vmul.f32 %v898, %v922
        %v924 = vmul.f32 %v900, %v922
        %925 = vmatprep.subr.mxu0 %v773
        %926 = vmatpush1.xpose.msra.mxu0 %v771
        %927 = vmatprep.subr.mxu0 %v779
        %928 = vmatpush1.xpose.msra.mxu0 %v777
        %929 = vmatprep.subr.mxu0 %v785
        %930 = vmatpush1.xpose.msra.mxu0 %v783
        %931 = vmatprep.subr.mxu0 %v791
        %932 = vmatpush1.xpose.msra.mxu0 %v789
        %933 = vmatprep.subr.mxu0 0.0
        %934 = vmatpush1.xpose.msra.mxu0 0.0
        %935 = vmatprep.subr.mxu0 0.0
        %936 = vmatpush1.xpose.msra.mxu0 0.0
        %937 = vmatprep.subr.mxu0 0.0
        %938 = vmatpush1.xpose.msra.mxu0 0.0
        %939 = vmatprep.subr.mxu0 0.0
        %940 = vmatpush1.xpose.msra.mxu0 0.0
        %941 = vmatprep.subr.mxu0 0.0
        %942 = vmatpush1.xpose.msra.mxu0 0.0
        %943 = vmatprep.subr.mxu0 0.0
        %944 = vmatpush1.xpose.msra.mxu0 0.0
        %945 = vmatprep.subr.mxu0 0.0
        %946 = vmatpush1.xpose.msra.mxu0 0.0
        %947 = vmatprep.subr.mxu0 0.0
        %948 = vmatpush1.xpose.msra.mxu0 0.0
        %949 = vmatprep.subr.mxu0 0.0
        %950 = vmatpush1.xpose.msra.mxu0 0.0
        %951 = vmatprep.subr.mxu0 0.0
        %952 = vmatpush1.xpose.msra.mxu0 0.0
        %953 = vmatprep.subr.mxu0 0.0
        %954 = vmatpush1.xpose.msra.mxu0 0.0
        %955 = vmatprep.subr.mxu0 0.0
        %956 = vmatpush1.xpose.msra.mxu0 0.0
        %957 = vmatprep.subr.mxu0 0.0
        %958 = vmatpush1.xpose.msra.mxu0 0.0
        %959 = vmatprep.subr.mxu0 0.0
        %960 = vmatpush1.xpose.msra.mxu0 0.0
        %961 = vmatprep.subr.mxu0 0.0
        %962 = vmatpush1.xpose.msra.mxu0 0.0
        %963 = vmatprep.subr.mxu0 0.0
        %964 = vmatpush1.xpose.msra.mxu0 0.0
        %965 = vmatprep.subr.mxu0 0.0
        %966 = vmatpush1.xpose.msra.mxu0 0.0
        %967 = vmatprep.subr.mxu0 0.0
        %968 = vmatpush1.xpose.msra.mxu0 0.0
        %969 = vmatprep.subr.mxu0 0.0
        %970 = vmatpush1.xpose.msra.mxu0 0.0
        %971 = vmatprep.subr.mxu0 0.0
        %972 = vmatpush1.xpose.msra.mxu0 0.0
        %973 = vmatprep.subr.mxu0 0.0
        %974 = vmatpush1.xpose.msra.mxu0 0.0
        %975 = vmatprep.subr.mxu0 0.0
        %976 = vmatpush1.xpose.msra.mxu0 0.0
        %977 = vmatprep.subr.mxu0 0.0
        %978 = vmatpush1.xpose.msra.mxu0 0.0
        %979 = vmatprep.subr.mxu0 0.0
        %980 = vmatpush1.xpose.msra.mxu0 0.0
        %981 = vmatprep.subr.mxu0 0.0
        %982 = vmatpush1.xpose.msra.mxu0 0.0
        %983 = vmatprep.subr.mxu0 0.0
        %984 = vmatpush1.xpose.msra.mxu0 0.0
        %985 = vmatprep.subr.mxu0 0.0
        %986 = vmatpush1.xpose.msra.mxu0 0.0
        %987 = vmatprep.subr.mxu0 0.0
        %988 = vmatpush1.xpose.msra.mxu0 0.0
        %989 = vmatprep.mubr.f32.mxu0 %v915
        %990 = vmatmul.mubr.f32.gmra.mrb[0].mxu0 %v914
        %v991 = vpop.f32.mrb[0].mxu0
        %v992 = vadd.f32 0.0, %v991
        %v993 = vpop.f32.mrb[0].mxu0
        %994 = vmatprep.mubr.f32.mxu0 %v918
        %995 = vmatmul.mubr.f32.gmra.mrb[0].mxu0 %v917
        %v996 = vpop.f32.mrb[0].mxu0
        %v997 = vadd.f32 0.0, %v996
        %v998 = vpop.f32.mrb[0].mxu0
        %999 = vmatprep.mubr.f32.mxu0 %v921
        %1000 = vmatmul.mubr.f32.gmra.mrb[0].mxu0 %v920
        %v1001 = vpop.f32.mrb[0].mxu0
        %v1002 = vadd.f32 0.0, %v1001
        %v1003 = vpop.f32.mrb[0].mxu0
        %1004 = vmatprep.mubr.f32.mxu0 %v924
        %1005 = vmatmul.mubr.f32.gmra.mrb[0].mxu0 %v923
        %v1006 = vpop.f32.mrb[0].mxu0
        %v1007 = vadd.f32 0.0, %v1006
        %v1008 = vpop.f32.mrb[0].mxu0
        %1009 = vdwg.mxu0
        %1010 = vxpose.xlu0.b32.start [1/16] %v992, 128
        %1011 = vxpose.xlu0.b32.cont [2/16] %v997, 128
        %1012 = vxpose.xlu0.b32.cont [3/16] %v1002, 128
        %1013 = vxpose.xlu0.b32.cont [4/16] %v1007, 128
        %1014 = vxpose.xlu0.b32.cont [5/16] 0.0, 128
        %1015 = vxpose.xlu0.b32.cont [6/16] 0.0, 128
        %1016 = vxpose.xlu0.b32.cont [7/16] 0.0, 128
        %1017 = vxpose.xlu0.b32.cont [8/16] 0.0, 128
        %1018 = vxpose.xlu0.b32.cont [9/16] 0.0, 128
        %1019 = vxpose.xlu0.b32.cont [10/16] 0.0, 128
        %1020 = vxpose.xlu0.b32.cont [11/16] 0.0, 128
        %1021 = vxpose.xlu0.b32.cont [12/16] 0.0, 128
        %1022 = vxpose.xlu0.b32.cont [13/16] 0.0, 128
        %1023 = vxpose.xlu0.b32.cont [14/16] 0.0, 128
        %1024 = vxpose.xlu0.b32.cont [15/16] 0.0, 128
        %1025 = vxpose.xlu0.b32.end [16/16] 0.0, 128
        %v1026 = vpop.trf.xlu0
        %v1027 = vpop.trf.xlu0
        %v1028 = vpop.trf.xlu0
        %v1029 = vpop.trf.xlu0
        %v1030 = vpop.trf.xlu0
        %v1031 = vpop.trf.xlu0
        %v1032 = vpop.trf.xlu0
        %v1033 = vpop.trf.xlu0
        %v1034 = vpop.trf.xlu0
        %v1035 = vpop.trf.xlu0
        %v1036 = vpop.trf.xlu0
        %v1037 = vpop.trf.xlu0
        %v1038 = vpop.trf.xlu0
        %v1039 = vpop.trf.xlu0
        %v1040 = vpop.trf.xlu0
        %v1041 = vpop.trf.xlu0
        %vm1042 = vcmask 261120
        %v1044 = vsel %vm1042, %v1026, 0
        %v1047 = vsel %vm1042, %v1027, 0
        %v1050 = vsel %vm1042, %v1028, 0
        %v1053 = vsel %vm1042, %v1029, 0
        %1055 = vmatprep.subr.mxu0 %v858
        %1056 = vmatpush1.msra.mxu0 %v857
        %1057 = vmatprep.subr.mxu0 %v860
        %1058 = vmatpush1.msra.mxu0 %v859
        %1059 = vmatprep.subr.mxu0 %v862
        %1060 = vmatpush1.msra.mxu0 %v861
        %1061 = vmatprep.subr.mxu0 %v864
        %1062 = vmatpush1.msra.mxu0 %v863
        %1063 = vmatprep.subr.mxu0 0.0
        %1064 = vmatpush1.msra.mxu0 0.0
        %1065 = vmatprep.subr.mxu0 0.0
        %1066 = vmatpush1.msra.mxu0 0.0
        %1067 = vmatprep.subr.mxu0 0.0
        %1068 = vmatpush1.msra.mxu0 0.0
        %1069 = vmatprep.subr.mxu0 0.0
        %1070 = vmatpush1.msra.mxu0 0.0
        %1071 = vmatprep.subr.mxu0 0.0
        %1072 = vmatpush1.msra.mxu0 0.0
        %1073 = vmatprep.subr.mxu0 0.0
        %1074 = vmatpush1.msra.mxu0 0.0
        %1075 = vmatprep.subr.mxu0 0.0
        %1076 = vmatpush1.msra.mxu0 0.0
        %1077 = vmatprep.subr.mxu0 0.0
        %1078 = vmatpush1.msra.mxu0 0.0
        %1079 = vmatprep.subr.mxu0 0.0
        %1080 = vmatpush1.msra.mxu0 0.0
        %1081 = vmatprep.subr.mxu0 0.0
        %1082 = vmatpush1.msra.mxu0 0.0
        %1083 = vmatprep.subr.mxu0 0.0
        %1084 = vmatpush1.msra.mxu0 0.0
        %1085 = vmatprep.subr.mxu0 0.0
        %1086 = vmatpush1.msra.mxu0 0.0
        %1087 = vmatprep.subr.mxu0 0.0
        %1088 = vmatpush1.msra.mxu0 0.0
        %1089 = vmatprep.subr.mxu0 0.0
        %1090 = vmatpush1.msra.mxu0 0.0
        %1091 = vmatprep.subr.mxu0 0.0
        %1092 = vmatpush1.msra.mxu0 0.0
        %1093 = vmatprep.subr.mxu0 0.0
        %1094 = vmatpush1.msra.mxu0 0.0
        %1095 = vmatprep.subr.mxu0 0.0
        %1096 = vmatpush1.msra.mxu0 0.0
        %1097 = vmatprep.subr.mxu0 0.0
        %1098 = vmatpush1.msra.mxu0 0.0
        %1099 = vmatprep.subr.mxu0 0.0
        %1100 = vmatpush1.msra.mxu0 0.0
        %1101 = vmatprep.subr.mxu0 0.0
        %1102 = vmatpush1.msra.mxu0 0.0
        %1103 = vmatprep.subr.mxu0 0.0
        %1104 = vmatpush1.msra.mxu0 0.0
        %1105 = vmatprep.subr.mxu0 0.0
        %1106 = vmatpush1.msra.mxu0 0.0
        %1107 = vmatprep.subr.mxu0 0.0
        %1108 = vmatpush1.msra.mxu0 0.0
        %1109 = vmatprep.subr.mxu0 0.0
        %1110 = vmatpush1.msra.mxu0 0.0
        %1111 = vmatprep.subr.mxu0 0.0
        %1112 = vmatpush1.msra.mxu0 0.0
        %1113 = vmatprep.subr.mxu0 0.0
        %1114 = vmatpush1.msra.mxu0 0.0
        %1115 = vmatprep.subr.mxu0 0.0
        %1116 = vmatpush1.msra.mxu0 0.0
        %1117 = vmatprep.subr.mxu0 0.0
        %1118 = vmatpush1.msra.mxu0 0.0
        %1119 = vmatprep.mubr.f32.mxu0 0.0
        %1120 = vmatmul.mubr.f32.gmra.mrb[0].mxu0 %v1044
        %v1121 = vpop.f32.mrb[0].mxu0
        %v1122 = vadd.f32 0.0, %v1121
        %v1123 = vpop.f32.mrb[0].mxu0
        %v1124 = vadd.f32 0.0, %v1123
        %1125 = vmatprep.mubr.f32.mxu0 0.0
        %1126 = vmatmul.mubr.f32.gmra.mrb[0].mxu0 %v1047
        %v1127 = vpop.f32.mrb[0].mxu0
        %v1128 = vadd.f32 0.0, %v1127
        %v1129 = vpop.f32.mrb[0].mxu0
        %v1130 = vadd.f32 0.0, %v1129
        %1131 = vmatprep.mubr.f32.mxu0 0.0
        %1132 = vmatmul.mubr.f32.gmra.mrb[0].mxu0 %v1050
        %v1133 = vpop.f32.mrb[0].mxu0
        %v1134 = vadd.f32 0.0, %v1133
        %v1135 = vpop.f32.mrb[0].mxu0
        %v1136 = vadd.f32 0.0, %v1135
        %1137 = vmatprep.mubr.f32.mxu0 0.0
        %1138 = vmatmul.mubr.f32.gmra.mrb[0].mxu0 %v1053
        %v1139 = vpop.f32.mrb[0].mxu0
        %v1140 = vadd.f32 0.0, %v1139
        %v1141 = vpop.f32.mrb[0].mxu0
        %v1142 = vadd.f32 0.0, %v1141
        %1143 = vdwg.mxu0
        %v1144 = vld [vmem:[#allocation3] sm:$0xff]
        %v1145 = vld [vmem:[%s366] sm:$0xf]
        %v1147 = vsel %vm1042, %v1145, 0
        %1149 = vmatprep.subr.mxu0 %v1124
        %1150 = vmatpush1.msra.mxu0 %v1122
        %1151 = vmatprep.subr.mxu0 %v1130
        %1152 = vmatpush1.msra.mxu0 %v1128
        %1153 = vmatprep.subr.mxu0 %v1136
        %1154 = vmatpush1.msra.mxu0 %v1134
        %1155 = vmatprep.subr.mxu0 %v1142
        %1156 = vmatpush1.msra.mxu0 %v1140
        %1157 = vmatprep.subr.mxu0 0.0
        %1158 = vmatpush1.msra.mxu0 0.0
        %1159 = vmatprep.subr.mxu0 0.0
        %1160 = vmatpush1.msra.mxu0 0.0
        %1161 = vmatprep.subr.mxu0 0.0
        %1162 = vmatpush1.msra.mxu0 0.0
        %1163 = vmatprep.subr.mxu0 0.0
        %1164 = vmatpush1.msra.mxu0 0.0
        %1165 = vmatprep.subr.mxu0 0.0
        %1166 = vmatpush1.msra.mxu0 0.0
        %1167 = vmatprep.subr.mxu0 0.0
        %1168 = vmatpush1.msra.mxu0 0.0
        %1169 = vmatprep.subr.mxu0 0.0
        %1170 = vmatpush1.msra.mxu0 0.0
        %1171 = vmatprep.subr.mxu0 0.0
        %1172 = vmatpush1.msra.mxu0 0.0
        %1173 = vmatprep.subr.mxu0 0.0
        %1174 = vmatpush1.msra.mxu0 0.0
        %1175 = vmatprep.subr.mxu0 0.0
        %1176 = vmatpush1.msra.mxu0 0.0
        %1177 = vmatprep.subr.mxu0 0.0
        %1178 = vmatpush1.msra.mxu0 0.0
        %1179 = vmatprep.subr.mxu0 0.0
        %1180 = vmatpush1.msra.mxu0 0.0
        %1181 = vmatprep.subr.mxu0 0.0
        %1182 = vmatpush1.msra.mxu0 0.0
        %1183 = vmatprep.subr.mxu0 0.0
        %1184 = vmatpush1.msra.mxu0 0.0
        %1185 = vmatprep.subr.mxu0 0.0
        %1186 = vmatpush1.msra.mxu0 0.0
        %1187 = vmatprep.subr.mxu0 0.0
        %1188 = vmatpush1.msra.mxu0 0.0
        %1189 = vmatprep.subr.mxu0 0.0
        %1190 = vmatpush1.msra.mxu0 0.0
        %1191 = vmatprep.subr.mxu0 0.0
        %1192 = vmatpush1.msra.mxu0 0.0
        %1193 = vmatprep.subr.mxu0 0.0
        %1194 = vmatpush1.msra.mxu0 0.0
        %1195 = vmatprep.subr.mxu0 0.0
        %1196 = vmatpush1.msra.mxu0 0.0
        %1197 = vmatprep.subr.mxu0 0.0
        %1198 = vmatpush1.msra.mxu0 0.0
        %1199 = vmatprep.subr.mxu0 0.0
        %1200 = vmatpush1.msra.mxu0 0.0
        %1201 = vmatprep.subr.mxu0 0.0
        %1202 = vmatpush1.msra.mxu0 0.0
        %1203 = vmatprep.subr.mxu0 0.0
        %1204 = vmatpush1.msra.mxu0 0.0
        %1205 = vmatprep.subr.mxu0 0.0
        %1206 = vmatpush1.msra.mxu0 0.0
        %1207 = vmatprep.subr.mxu0 0.0
        %1208 = vmatpush1.msra.mxu0 0.0
        %1209 = vmatprep.subr.mxu0 0.0
        %1210 = vmatpush1.msra.mxu0 0.0
        %1211 = vmatprep.subr.mxu0 0.0
        %1212 = vmatpush1.msra.mxu0 0.0
        %1213 = vmatprep.mubr.f32.mxu0 0.0
        %1214 = vmatmul.mubr.f32.gmra.mrb[0].mxu0 %v1147
        %v1215 = vpop.f32.mrb[0].mxu0
        %v1216 = vadd.f32 0.0, %v1215
        %v1217 = vpop.f32.mrb[0].mxu0
        %v1218 = vadd.f32 0.0, %v1217
        %1219 = vdwg.mxu0
        %v1222 = vcombine.low %v1216, %v1218
        %v1224 = vadd.f32 %v1144, %v1222
        %1225 = vst [vmem:[#allocation3] sm:$0xff] %v1224
        %p1226 = scmp.eq.s32.totalorder %s33, 3
        // Predicated region
        $region73: #{tpu_custom_call.1} parent=43 // pred_check
          %p1227 = pneg %p1226
        $region74: #{tpu_custom_call.1} parent=43 // pred_check_branch
          %1229 = sbr.rel (%p1227) target = $region76
        $region75: #{tpu_custom_call.1} parent=43 // pred_region
          %v1230 = vld [vmem:[#allocation3] sm:$0xff]
          %v1231 = vld [vmem:[#allocation10] sm:$0xf]
          %1233 = vset.pattern.permute.xlu0 0
          %1234 = vperm.xlu0 %1233, %v1231
          %v1235 = vpop.permute.xlu0 %1234
          %v1237 = vunpack.c.l.s4 839922192
          %v1238 = vunpack.c.0.s8 %v1237
          %v1239 = vlaneseq
          %v1240 = vshrl.u32 %v1239, 7
          %v1241 = vsub.s32 %v1238, %v1240
          %v1242 = vrot.slane %v1235, %v1241
          %v1244 = vadd.f32 %v1230, %v1242
          %v1245 = vmul.f32 %v1244, %v1244
          %v1247 = vcombine.high %v1245, %v1245
          %v1249 = vsel %vm487, %v1245, 0.0
          %v1250 = vrot.slane %v1249, 4
          %v1251 = vadd.f32 %v1249, %v1250
          %v1252 = vrot.slane %v1251, 2
          %v1253 = vadd.f32 %v1251, %v1252
          %v1254 = vrot.slane %v1253, 1
          %v1255 = vadd.f32 %v1253, %v1254
          %v1256 = vsel %vm487, %v1247, 0.0
          %v1257 = vrot.slane %v1256, 4
          %v1258 = vadd.f32 %v1256, %v1257
          %v1259 = vrot.slane %v1258, 2
          %v1260 = vadd.f32 %v1258, %v1259
          %v1261 = vrot.slane %v1260, 1
          %v1262 = vadd.f32 %v1260, %v1261
          %v1263 = vmax.f32 %v1255, 1e-24
          %v1264 = vmax.f32 %v1262, 1e-24
          %v1265 = vrsqrt.pop %v1263
          %v1266 = vrsqrt.pop %v1264
          %v1267 = vld [vmem:[#allocation13] sm:$0xf]
          %v1268 = vmul.f32 %v1267, 2.0
          %v1271 = vcombine.low %v1265, %v1266
          %v1273 = vmul.f32 %v1244, %v1271
          %1275 = vset.pattern.permute.xlu0 0
          %1276 = vperm.xlu0 %1275, %v1268
          %v1277 = vpop.permute.xlu0 %1276
          %v1279 = vunpack.c.l.s4 839922192
          %v1280 = vunpack.c.0.s8 %v1279
          %v1281 = vlaneseq
          %v1282 = vshrl.u32 %v1281, 7
          %v1283 = vsub.s32 %v1280, %v1282
          %v1284 = vrot.slane %v1277, %v1283
          %v1286 = vmul.f32 %v1273, %v1284
          %1287 = vst [vmem:[%s416] sm:$0xff] %v1286
        $region76: #{tpu_custom_call.1} parent=43 // pred_fallthru
          _
        %s1288 = sand.u32 %s189, 1
        %s1289 = scalar_lea.sflag [#allocation6], %s1288
        %s1290 = sand.u32 %s189, 1
        %s1291 = smul.addr %s1290, 8
        %s1292 = scalar_lea.vmem [#allocation15], %s1291
        // Predicated region
        $region77: #{tpu_custom_call.1} parent=43 // pred_check
          %p1293 = pneg %p199
        $region78: #{tpu_custom_call.1} parent=43 // pred_check_branch
          %1295 = sbr.rel (%p1293) target = $region80
        $region79: #{tpu_custom_call.1} parent=43 // pred_region
          %s1297 = ssub.s32 128, 128
          %1298 = vsyncadd %s1289, %s1297
          %s1299 = smul.addr %s32, 2
          %s1300 = smul.addr %s1299, 64
          %s1301 = scalar_lea.hbm %s6, %s1300
          %s1303 = sshll.u32 %s1292, 4
          %s1304 = int_to_ptr.vmem [resolvable:$true] %s1303
          %1306 = dma.vmem_to_hbm [thread:$0]  %s1304, 128, %s1301, %s1289
        $region80: #{tpu_custom_call.1} parent=43 // pred_fallthru
          _
      $region44: #{tpu_custom_call.1} parent=5 // pred_fallthru
        _
      %p1307 = scmp.le.s32.totalorder 2, %s23
      // Predicated region
      $region81: #{tpu_custom_call.1} parent=5 // pred_check
        %p1308 = pneg %p1307
      $region82: #{tpu_custom_call.1} parent=5 // pred_check_branch
        %1310 = sbr.rel (%p1308) target = $region84
      $region83: #{tpu_custom_call.1} parent=5 // pred_region
        %s1311 = ssub.s32 %s23, 2
        // Predicated region
        $region85: #{tpu_custom_call.1} parent=83 // pred_check
          %p1312 = pneg %p205
        $region86: #{tpu_custom_call.1} parent=83 // pred_check_branch
          %1314 = sbr.rel (%p1312) target = $region88
        $region87: #{tpu_custom_call.1} parent=83 // pred_region
          %s1315 = sand.u32 %s190, 1
          %s1316 = scalar_lea.sflag [#allocation6], %s1315
          %s1317 = sand.u32 %s190, 1
          %s1318 = smul.addr %s1317, 8
          %s1319 = scalar_lea.vmem [#allocation15], %s1318
          %1320 = dma.done %s1316, 128
        $region88: #{tpu_custom_call.1} parent=83 // pred_fallthru
          _
      $region84: #{tpu_custom_call.1} parent=5 // pred_fallthru
        _
    $region6: #{tpu_custom_call.1} parent=1 // loop_footer
      %s27 = sadd.s32 1, %s23
    $region7: #{tpu_custom_call.1} parent=1 // loop_footer_branch
      %22 = sbr.rel target = $region3
    $region8: #{tpu_custom_call.1} parent=1 // loop_exit
      _
    %1321 = vsyncpa [#allocation5], 1
    %s1322 = scalar_lea.sflag [#allocation5], 1
    %1323 = vsyncpa %s1322, 1
    %1324 = vsyncpa [#allocation8], 1
    %s1325 = scalar_lea.sflag [#allocation8], 1
    %1326 = vsyncpa %s1325, 1
    %1327 = vsyncpa [#allocation11], 1
    %1328 = vsyncpa [#allocation14], 1
    %1329 = vsyncpa [#allocation6], 1
    %s1330 = scalar_lea.sflag [#allocation6], 1
    %1331 = vsyncpa %s1330, 1

</llo_original>
